<compile_context>
chip_gen: v7x
topology: tpu7x:2x2x1
jax: 0.10.0
libtpu: 0.0.40
codegen_flags: <defaults>
</compile_context>

<pallas_src>
import functools
import math

import jax
import jax.numpy as jnp
from jax import lax
from jax.experimental import pallas as pl
from jax.experimental.pallas import tpu as pltpu


def _basic_block_kernel(H, W, TB, MARGIN,
                        x_ref, w1_ref, s1_ref, b1_ref,
                        w2_ref, s2_ref, b2_ref, ecaw_ref,
                        out_ref, stage_ref):
    # x_ref    : (TB, C, H*W)  f32   input block (also the residual identity)
    # w1_ref   : (C, 9*C)      bf16  conv1 taps, tap-major / channel-minor
    # w2_ref   : (C, 9*C)      bf16  conv2 taps
    # s*/b*    : (C, 1)        f32   folded eval-mode BatchNorm scale / bias
    # ecaw_ref : (C, ksz)      f32   ECA Conv1d taps, replicated over channels
    # out_ref  : (TB, C, H*W)  f32
    # stage_ref: (C, TB*(H*W + 2*MARGIN)) bf16 staging slab; per-image margins
    #            are zeroed each step (implicit zero padding at the h-borders).
    C = x_ref.shape[1]
    HW = H * W
    PITCH = HW + 2 * MARGIN
    N = TB * HW
    ksz = ecaw_ref.shape[1]
    kpad = ksz // 2

    # --- zero the per-image margins (tiny, 128-lane-aligned stores) ----------
    zmargin = jnp.zeros((C, MARGIN), dtype=stage_ref.dtype)
    for t in range(TB):
        stage_ref[:, t * PITCH:t * PITCH + MARGIN] = zmargin
        stage_ref[:, t * PITCH + MARGIN + HW:(t + 1) * PITCH] = zmargin

    # --- w-border masks: only the 6 taps with dw != 0 need a select ----------
    # (HW % W == 0, so "lane % W" is the per-image column for every image.)
    ww = lax.broadcasted_iota(jnp.int32, (1, N), 1) % W
    wmask = {-1: ww >= 1, 0: None, 1: ww <= W - 2}

    def stage_image(t, img):
        base = t * PITCH + MARGIN
        stage_ref[:, base:base + HW] = img.astype(stage_ref.dtype)

    def conv3x3_bn(w_ref, s_ref, b_ref):
        # im2col: gather the 9 shifted bf16 taps (w-borders masked; zeroed
        # margins handle the h-borders) and contract them in ONE MXU matmul
        # with K = 9*C, N = TB*H*W, f32 accumulation.
        cols = []
        for dh in (-1, 0, 1):
            for dw in (-1, 0, 1):
                off = dh * W + dw
                segs = [stage_ref[:, t * PITCH + MARGIN + off:
                                  t * PITCH + MARGIN + off + HW]
                        for t in range(TB)]
                tap = segs[0] if TB == 1 else jnp.concatenate(segs, axis=1)
                if wmask[dw] is not None:
                    tap = jnp.where(wmask[dw], tap, jnp.zeros((), tap.dtype))
                cols.append(tap)
        patches = jnp.concatenate(cols, axis=0)                     # (9C, N) bf16
        acc = jnp.dot(w_ref[...], patches,
                      preferred_element_type=jnp.float32)           # (C, N) f32
        return acc * s_ref[...] + b_ref[...]                        # folded BN

    # ---- conv1 + bn1 + relu --------------------------------------------------
    for t in range(TB):
        stage_image(t, x_ref[t])
    out1 = jnp.maximum(conv3x3_bn(w1_ref, s1_ref, b1_ref), 0.0)

    # ---- conv2 + bn2 ---------------------------------------------------------
    for t in range(TB):
        stage_image(t, out1[:, t * HW:(t + 1) * HW])
    out2 = conv3x3_bn(w2_ref, s2_ref, b2_ref)

    # ---- ECA: per-image global avg pool -> k-tap banded 1-D conv over channels
    #      done on the VPU (sublane shifts of the tiny (C, TB) average) -> gate.
    avg = jnp.concatenate(
        [jnp.mean(out2[:, t * HW:(t + 1) * HW], axis=1, keepdims=True)
         for t in range(TB)], axis=1)                                # (C, TB) f32
    acc = ecaw_ref[:, kpad:kpad + 1] * avg
    for j in range(ksz):
        if j == kpad:
            continue
        d = j - kpad
        if d > 0:
            shifted = jnp.concatenate(
                [avg[d:, :], jnp.zeros((d, TB), avg.dtype)], axis=0)
        else:
            shifted = jnp.concatenate(
                [jnp.zeros((-d, TB), avg.dtype), avg[:d, :]], axis=0)
        acc = acc + ecaw_ref[:, j:j + 1] * shifted
    attn = jax.nn.sigmoid(acc)                                       # (C, TB)

    # ---- gate + residual add + final ReLU: one lane-dense store per image ----
    for t in range(TB):
        gated = out2[:, t * HW:(t + 1) * HW] * attn[:, t:t + 1]
        out_ref[t] = jnp.maximum(gated + x_ref[t], 0.0).astype(out_ref.dtype)


def _choose_batch_block(B, HW):
    """How many batch elements to process per grid step."""
    # Bigger per-step blocks amortize the ~0.35us/step grid overhead, enlarge
    # the x/out DMAs, and widen the MXU N dimension; cap around 2048 lanes.
    # TODO(synk): on v7x prefer B // tb >= 2 once B is big enough so the
    #             "parallel" batch axis feeds both TensorCores.
    target = max(1, 2048 // HW)
    tb = 1
    for cand in range(1, B + 1):
        if B % cand == 0 and cand <= target:
            tb = cand
    return tb


def basic_block_forward(x_nchw, params, *, batch_block=None):
    """x_nchw: (B, C, H, W) float32. Returns (B, C, H, W) float32."""
    w1, s1, b1, w2, s2, b2, eca_w = params
    B, C, H, W = x_nchw.shape
    Cin, Cout = w1.shape[2], w1.shape[3]
    assert C == Cin and Cin == Cout, "residual path requires Cin == Cout"

    HW = H * W
    MARGIN = -(-(W + 1) // 128) * 128            # >= W+1, rounded to 128 lanes
    TB = batch_block or _choose_batch_block(B, HW)
    assert B % TB == 0
    ksz = eca_w.shape[0]

    # Free reshape of NCHW: channels x flattened pixels per batch element.
    x3d = x_nchw.reshape(B, C, HW)

    # Kernel-format parameters (layout plumbing done once, outside the kernel):
    #   conv taps as (Cout, 9*Cin), tap-major / channel-minor, bf16 MXU operands;
    #   BN scale/bias as columns; ECA 1-D taps replicated over channels.
    w1_k = jnp.transpose(w1, (3, 0, 1, 2)).reshape(Cout, 9 * Cin).astype(jnp.bfloat16)
    w2_k = jnp.transpose(w2, (3, 0, 1, 2)).reshape(Cout, 9 * Cout).astype(jnp.bfloat16)
    s1c, b1c = s1.reshape(Cout, 1), b1.reshape(Cout, 1)
    s2c, b2c = s2.reshape(Cout, 1), b2.reshape(Cout, 1)
    ecaw = jnp.tile(eca_w.reshape(1, ksz).astype(jnp.float32), (Cout, 1))

    kernel = functools.partial(_basic_block_kernel, H, W, TB, MARGIN)

    out3d = pl.pallas_call(
        kernel,
        out_shape=jax.ShapeDtypeStruct((B, Cout, HW), jnp.float32),
        grid_spec=pltpu.PrefetchScalarGridSpec(
            num_scalar_prefetch=0,
            grid=(B // TB,),
            in_specs=[
                pl.BlockSpec((TB, Cin, HW), lambda b: (b, 0, 0)),     # x (one read)
                pl.BlockSpec((Cout, 9 * Cin), lambda b: (0, 0)),      # conv1 weights
                pl.BlockSpec((Cout, 1), lambda b: (0, 0)),            # bn1 scale
                pl.BlockSpec((Cout, 1), lambda b: (0, 0)),            # bn1 bias
                pl.BlockSpec((Cout, 9 * Cout), lambda b: (0, 0)),     # conv2 weights
                pl.BlockSpec((Cout, 1), lambda b: (0, 0)),            # bn2 scale
                pl.BlockSpec((Cout, 1), lambda b: (0, 0)),            # bn2 bias
                pl.BlockSpec((Cout, ksz), lambda b: (0, 0)),          # ECA taps
            ],
            out_specs=pl.BlockSpec((TB, Cout, HW), lambda b: (b, 0, 0)),
            # bf16 staging slab: TB images, each with zeroed +-MARGIN lane
            # margins (the implicit zero padding of the 3x3 convs).
            scratch_shapes=[
                pltpu.VMEM((Cout, TB * (HW + 2 * MARGIN)), jnp.bfloat16)],
        ),
        compiler_params=pltpu.CompilerParams(
            # Independent per-step output blocks -> shard the batch loop across
            # both TensorCores on v7x; harmless on single-TC v5e/v6e.
            dimension_semantics=("parallel",),
            # Explicit scoped-VMEM budget so larger batch/spatial blocks are not
            # capped by the 16/32 MiB defaults; 64 MiB is valid on v5e/v6e
            # (128 MiB physical) and exactly the physical budget of v7x.
            vmem_limit_bytes=64 * 1024 * 1024,
        ),
    )(x3d, w1_k, s1c, b1c, w2_k, s2c, b2c, ecaw)

    return out3d.reshape(B, Cout, H, W)


def make_params(key, cin, cout):
    """Deterministic synthetic parameters matching BasicBlock.__init__ shapes."""
    k1, k2, k3, k4, k5 = jax.random.split(key, 5)
    eps = 1e-5

    # Conv weights in HWIO (3, 3, Cin, Cout).
    w1 = jax.random.normal(k1, (3, 3, cin, cout), jnp.float32) / math.sqrt(9 * cin)
    w2 = jax.random.normal(k2, (3, 3, cout, cout), jnp.float32) / math.sqrt(9 * cout)

    # BatchNorm (eval mode) folded into scale/bias.
    def bn_fold(k):
        kg, kb, km, kv = jax.random.split(k, 4)
        gamma = 1.0 + 0.1 * jax.random.normal(kg, (cout,), jnp.float32)
        beta = 0.1 * jax.random.normal(kb, (cout,), jnp.float32)
        mean = 0.1 * jax.random.normal(km, (cout,), jnp.float32)
        var = 0.5 + jnp.abs(jax.random.normal(kv, (cout,), jnp.float32))
        scale = gamma * lax.rsqrt(var + eps)
        bias = beta - mean * scale
        return scale, bias

    s1, b1 = bn_fold(k3)
    s2, b2 = bn_fold(k4)

    # ECA Conv1d 1-D taps (kernel size from the ECA-Net formula, gamma=2, b=1).
    ksz = int(abs((math.log(cout, 2) + 1) / 2))
    ksz = ksz if ksz % 2 else ksz + 1
    eca_w = jax.random.normal(k5, (ksz,), jnp.float32) / math.sqrt(ksz)

    return (w1, s1, b1, w2, s2, b2, eca_w)


def reference_forward(x_nchw, params):
    """Pure-JAX reference (eval-mode BN).  Conv operands are rounded to bf16 to
    mirror the kernel's bf16-MXU / f32-accumulate numerics; everything else f32."""
    w1, s1, b1, w2, s2, b2, eca_w = params
    C = x_nchw.shape[1]

    def bf16_round(a):
        return a.astype(jnp.bfloat16).astype(jnp.float32)

    x = jnp.transpose(x_nchw, (0, 2, 3, 1))                     # NHWC
    dn = ("NHWC", "HWIO", "NHWC")
    out = lax.conv_general_dilated(bf16_round(x), bf16_round(w1), (1, 1),
                                   "SAME", dimension_numbers=dn)
    out = jnp.maximum(out * s1 + b1, 0.0)
    out = lax.conv_general_dilated(bf16_round(out), bf16_round(w2), (1, 1),
                                   "SAME", dimension_numbers=dn)
    out = out * s2 + b2

    # ECA: global avg pool -> 1-D conv over channels (as a banded matmul) -> gate.
    ksz = eca_w.shape[0]
    pad = ksz // 2
    idx = jnp.arange(C)
    t = idx[:, None] - idx[None, :] + pad
    band = (t >= 0) & (t < ksz)
    eca_mat = jnp.where(band, eca_w[jnp.clip(t, 0, ksz - 1)], 0.0)

    avg = out.mean(axis=(1, 2))                                 # (B, C)
    attn = jax.nn.sigmoid(avg @ eca_mat)
    out = out * attn[:, None, None, :]
    out = jnp.maximum(out + x, 0.0)
    return jnp.transpose(out, (0, 3, 1, 2))


if __name__ == "__main__":
    B, C, H, W = 2, 8, 16, 16
    key = jax.random.PRNGKey(0)
    kx, kp = jax.random.split(key)
    x = jax.random.normal(kx, (B, C, H, W), jnp.float32)
    params = make_params(kp, C, C)

    out = jax.block_until_ready(basic_block_forward(x, params))
    ref = jax.block_until_ready(reference_forward(x, params))

    assert out.shape == (B, C, H, W)
    ok = jnp.allclose(out, ref, atol=1e-2, rtol=1e-2)
    assert bool(ok), f"mismatch vs reference (max abs err {jnp.max(jnp.abs(out - ref))})"

    print("KERNEL_OK")
</pallas_src>

<mosaic_0001>
module attributes {stable_mosaic.version = 11 : i64} {
  func.func @_basic_block_kernel(%arg0: i32, %arg1: memref<2x8x256xf32, #tpu.memory_space<vmem>>, %arg2: memref<8x72xbf16, #tpu.memory_space<vmem>>, %arg3: memref<8x1xf32, #tpu.memory_space<vmem>>, %arg4: memref<8x1xf32, #tpu.memory_space<vmem>>, %arg5: memref<8x72xbf16, #tpu.memory_space<vmem>>, %arg6: memref<8x1xf32, #tpu.memory_space<vmem>>, %arg7: memref<8x1xf32, #tpu.memory_space<vmem>>, %arg8: memref<8x3xf32, #tpu.memory_space<vmem>>, %arg9: memref<2x8x256xf32, #tpu.memory_space<vmem>>, %arg10: memref<8x1024xbf16, #tpu.memory_space<vmem>>) attributes {dimension_semantics = [#tpu.dimension_semantics<parallel>], iteration_bounds = array<i64: 1>, scalar_prefetch = 0 : i64, scratch_operands = 1 : i64, tpu.core_type = #tpu.core_type<tc>, window_params = [{transform_indices = @transform_0, window_bounds = array<i64: 2, 8, 256>}, {pipeline_mode = #tpu.pipeline_mode<synchronous>, transform_indices = @transform_1, window_bounds = array<i64: 8, 72>}, {pipeline_mode = #tpu.pipeline_mode<synchronous>, transform_indices = @transform_2, window_bounds = array<i64: 8, 1>}, {pipeline_mode = #tpu.pipeline_mode<synchronous>, transform_indices = @transform_3, window_bounds = array<i64: 8, 1>}, {pipeline_mode = #tpu.pipeline_mode<synchronous>, transform_indices = @transform_4, window_bounds = array<i64: 8, 72>}, {pipeline_mode = #tpu.pipeline_mode<synchronous>, transform_indices = @transform_5, window_bounds = array<i64: 8, 1>}, {pipeline_mode = #tpu.pipeline_mode<synchronous>, transform_indices = @transform_6, window_bounds = array<i64: 8, 1>}, {pipeline_mode = #tpu.pipeline_mode<synchronous>, transform_indices = @transform_7, window_bounds = array<i64: 8, 3>}, {transform_indices = @transform_8, window_bounds = array<i64: 2, 8, 256>}]} {
    %cst = arith.constant 0.000000e+00 : bf16
    %0 = vector.broadcast %cst : bf16 to vector<8x128xbf16>
    %c0 = arith.constant 0 : index
    %c0_0 = arith.constant 0 : index
    %1 = vector.load %arg10[%c0, %c0_0] : memref<8x1024xbf16, #tpu.memory_space<vmem>>, vector<8x128xbf16>
    tpu.vector_store %arg10[%c0, %c0_0], %0 {strides = array<i32>} : memref<8x1024xbf16, #tpu.memory_space<vmem>>, vector<8x128xbf16>,
    %c0_1 = arith.constant 0 : index
    %c384 = arith.constant 384 : index
    %2 = vector.load %arg10[%c0_1, %c384] : memref<8x1024xbf16, #tpu.memory_space<vmem>>, vector<8x128xbf16>
    tpu.vector_store %arg10[%c0_1, %c384], %0 {strides = array<i32>} : memref<8x1024xbf16, #tpu.memory_space<vmem>>, vector<8x128xbf16>,
    %c0_2 = arith.constant 0 : index
    %c512 = arith.constant 512 : index
    %3 = vector.load %arg10[%c0_2, %c512] : memref<8x1024xbf16, #tpu.memory_space<vmem>>, vector<8x128xbf16>
    tpu.vector_store %arg10[%c0_2, %c512], %0 {strides = array<i32>} : memref<8x1024xbf16, #tpu.memory_space<vmem>>, vector<8x128xbf16>,
    %c0_3 = arith.constant 0 : index
    %c896 = arith.constant 896 : index
    %4 = vector.load %arg10[%c0_3, %c896] : memref<8x1024xbf16, #tpu.memory_space<vmem>>, vector<8x128xbf16>
    tpu.vector_store %arg10[%c0_3, %c896], %0 {strides = array<i32>} : memref<8x1024xbf16, #tpu.memory_space<vmem>>, vector<8x128xbf16>,
    %5 = tpu.iota {dimensions = array<i32: 1>} : vector<1x512xi32>
    %c16_i32 = arith.constant 16 : i32
    %c0_i32 = arith.constant 0 : i32
    %6 = arith.cmpi eq, %c16_i32, %c0_i32 : i32
    %c1_i32 = arith.constant 1 : i32
    %7 = arith.select %6, %c1_i32, %c16_i32 : i32
    %8 = vector.broadcast %7 : i32 to vector<1x512xi32>
    %9 = arith.remsi %5, %8 : vector<1x512xi32>
    %c0_i32_4 = arith.constant 0 : i32
    %10 = vector.broadcast %c0_i32_4 : i32 to vector<1x512xi32>
    %11 = arith.cmpi ne, %9, %10 : vector<1x512xi32>
    %c0_i32_5 = arith.constant 0 : i32
    %12 = vector.broadcast %c0_i32_5 : i32 to vector<1x512xi32>
    %13 = arith.cmpi slt, %9, %12 : vector<1x512xi32>
    %c0_i32_6 = arith.constant 0 : i32
    %14 = arith.cmpi slt, %7, %c0_i32_6 : i32
    %15 = vector.broadcast %14 : i1 to vector<1x512xi1>
    %16 = vector.broadcast %15 : vector<1x512xi1> to vector<1x512xi1>
    %17 = arith.xori %13, %16 : vector<1x512xi1>
    %18 = arith.andi %17, %11 : vector<1x512xi1>
    %19 = vector.broadcast %7 : i32 to vector<1x512xi32>
    %20 = arith.addi %9, %19 : vector<1x512xi32>
    %21 = arith.select %18, %20, %9 : vector<1x512xi1>, vector<1x512xi32>
    %c1_i32_7 = arith.constant 1 : i32
    %22 = vector.broadcast %c1_i32_7 : i32 to vector<1x512xi32>
    %23 = arith.cmpi sge, %21, %22 : vector<1x512xi32>
    %c14_i32 = arith.constant 14 : i32
    %24 = vector.broadcast %c14_i32 : i32 to vector<1x512xi32>
    %25 = arith.cmpi sle, %21, %24 : vector<1x512xi32>
    %c0_8 = arith.constant 0 : index
    %c0_9 = arith.constant 0 : index
    %c0_10 = arith.constant 0 : index
    %26 = vector.load %arg1[%c0_8, %c0_9, %c0_10] : memref<2x8x256xf32, #tpu.memory_space<vmem>>, vector<1x8x256xf32>
    %27 = vector.shape_cast %26 : vector<1x8x256xf32> to vector<8x256xf32>
    %28 = arith.truncf %27 : vector<8x256xf32> to vector<8x256xbf16>
    %c0_11 = arith.constant 0 : index
    %c128 = arith.constant 128 : index
    %29 = vector.load %arg10[%c0_11, %c128] : memref<8x1024xbf16, #tpu.memory_space<vmem>>, vector<8x256xbf16>
    tpu.vector_store %arg10[%c0_11, %c128], %28 {strides = array<i32>} : memref<8x1024xbf16, #tpu.memory_space<vmem>>, vector<8x256xbf16>,
    %c1 = arith.constant 1 : index
    %c0_12 = arith.constant 0 : index
    %c0_13 = arith.constant 0 : index
    %30 = vector.load %arg1[%c1, %c0_12, %c0_13] : memref<2x8x256xf32, #tpu.memory_space<vmem>>, vector<1x8x256xf32>
    %31 = vector.shape_cast %30 : vector<1x8x256xf32> to vector<8x256xf32>
    %32 = arith.truncf %31 : vector<8x256xf32> to vector<8x256xbf16>
    %c0_14 = arith.constant 0 : index
    %c640 = arith.constant 640 : index
    %33 = vector.load %arg10[%c0_14, %c640] : memref<8x1024xbf16, #tpu.memory_space<vmem>>, vector<8x256xbf16>
    tpu.vector_store %arg10[%c0_14, %c640], %32 {strides = array<i32>} : memref<8x1024xbf16, #tpu.memory_space<vmem>>, vector<8x256xbf16>,
    %c0_15 = arith.constant 0 : index
    %c111 = arith.constant 111 : index
    %34 = vector.load %arg10[%c0_15, %c111] : memref<8x1024xbf16, #tpu.memory_space<vmem>>, vector<8x256xbf16>
    %c0_16 = arith.constant 0 : index
    %c623 = arith.constant 623 : index
    %35 = vector.load %arg10[%c0_16, %c623] : memref<8x1024xbf16, #tpu.memory_space<vmem>>, vector<8x256xbf16>
    %36 = tpu.concatenate %34, %35 in 1 : vector<8x256xbf16>, vector<8x256xbf16> -> vector<8x512xbf16>
    %cst_17 = arith.constant 0.000000e+00 : bf16
    %37 = vector.shape_cast %23 : vector<1x512xi1> to vector<1x512xi1>
    %38 = vector.broadcast %37 : vector<1x512xi1> to vector<8x512xi1>
    %39 = vector.broadcast %cst_17 : bf16 to vector<8x512xbf16>
    %40 = arith.select %38, %36, %39 : vector<8x512xi1>, vector<8x512xbf16>
    %c0_18 = arith.constant 0 : index
    %c112 = arith.constant 112 : index
    %41 = vector.load %arg10[%c0_18, %c112] : memref<8x1024xbf16, #tpu.memory_space<vmem>>, vector<8x256xbf16>
    %c0_19 = arith.constant 0 : index
    %c624 = arith.constant 624 : index
    %42 = vector.load %arg10[%c0_19, %c624] : memref<8x1024xbf16, #tpu.memory_space<vmem>>, vector<8x256xbf16>
    %43 = tpu.concatenate %41, %42 in 1 : vector<8x256xbf16>, vector<8x256xbf16> -> vector<8x512xbf16>
    %c0_20 = arith.constant 0 : index
    %c113 = arith.constant 113 : index
    %44 = vector.load %arg10[%c0_20, %c113] : memref<8x1024xbf16, #tpu.memory_space<vmem>>, vector<8x256xbf16>
    %c0_21 = arith.constant 0 : index
    %c625 = arith.constant 625 : index
    %45 = vector.load %arg10[%c0_21, %c625] : memref<8x1024xbf16, #tpu.memory_space<vmem>>, vector<8x256xbf16>
    %46 = tpu.concatenate %44, %45 in 1 : vector<8x256xbf16>, vector<8x256xbf16> -> vector<8x512xbf16>
    %cst_22 = arith.constant 0.000000e+00 : bf16
    %47 = vector.shape_cast %25 : vector<1x512xi1> to vector<1x512xi1>
    %48 = vector.broadcast %47 : vector<1x512xi1> to vector<8x512xi1>
    %49 = vector.broadcast %cst_22 : bf16 to vector<8x512xbf16>
    %50 = arith.select %48, %46, %49 : vector<8x512xi1>, vector<8x512xbf16>
    %c0_23 = arith.constant 0 : index
    %c127 = arith.constant 127 : index
    %51 = vector.load %arg10[%c0_23, %c127] : memref<8x1024xbf16, #tpu.memory_space<vmem>>, vector<8x256xbf16>
    %c0_24 = arith.constant 0 : index
    %c639 = arith.constant 639 : index
    %52 = vector.load %arg10[%c0_24, %c639] : memref<8x1024xbf16, #tpu.memory_space<vmem>>, vector<8x256xbf16>
    %53 = tpu.concatenate %51, %52 in 1 : vector<8x256xbf16>, vector<8x256xbf16> -> vector<8x512xbf16>
    %cst_25 = arith.constant 0.000000e+00 : bf16
    %54 = vector.shape_cast %23 : vector<1x512xi1> to vector<1x512xi1>
    %55 = vector.broadcast %54 : vector<1x512xi1> to vector<8x512xi1>
    %56 = vector.broadcast %cst_25 : bf16 to vector<8x512xbf16>
    %57 = arith.select %55, %53, %56 : vector<8x512xi1>, vector<8x512xbf16>
    %c0_26 = arith.constant 0 : index
    %c128_27 = arith.constant 128 : index
    %58 = vector.load %arg10[%c0_26, %c128_27] : memref<8x1024xbf16, #tpu.memory_space<vmem>>, vector<8x256xbf16>
    %c0_28 = arith.constant 0 : index
    %c640_29 = arith.constant 640 : index
    %59 = vector.load %arg10[%c0_28, %c640_29] : memref<8x1024xbf16, #tpu.memory_space<vmem>>, vector<8x256xbf16>
    %60 = tpu.concatenate %58, %59 in 1 : vector<8x256xbf16>, vector<8x256xbf16> -> vector<8x512xbf16>
    %c0_30 = arith.constant 0 : index
    %c129 = arith.constant 129 : index
    %61 = vector.load %arg10[%c0_30, %c129] : memref<8x1024xbf16, #tpu.memory_space<vmem>>, vector<8x256xbf16>
    %c0_31 = arith.constant 0 : index
    %c641 = arith.constant 641 : index
    %62 = vector.load %arg10[%c0_31, %c641] : memref<8x1024xbf16, #tpu.memory_space<vmem>>, vector<8x256xbf16>
    %63 = tpu.concatenate %61, %62 in 1 : vector<8x256xbf16>, vector<8x256xbf16> -> vector<8x512xbf16>
    %cst_32 = arith.constant 0.000000e+00 : bf16
    %64 = vector.shape_cast %25 : vector<1x512xi1> to vector<1x512xi1>
    %65 = vector.broadcast %64 : vector<1x512xi1> to vector<8x512xi1>
    %66 = vector.broadcast %cst_32 : bf16 to vector<8x512xbf16>
    %67 = arith.select %65, %63, %66 : vector<8x512xi1>, vector<8x512xbf16>
    %c0_33 = arith.constant 0 : index
    %c143 = arith.constant 143 : index
    %68 = vector.load %arg10[%c0_33, %c143] : memref<8x1024xbf16, #tpu.memory_space<vmem>>, vector<8x256xbf16>
    %c0_34 = arith.constant 0 : index
    %c655 = arith.constant 655 : index
    %69 = vector.load %arg10[%c0_34, %c655] : memref<8x1024xbf16, #tpu.memory_space<vmem>>, vector<8x256xbf16>
    %70 = tpu.concatenate %68, %69 in 1 : vector<8x256xbf16>, vector<8x256xbf16> -> vector<8x512xbf16>
    %cst_35 = arith.constant 0.000000e+00 : bf16
    %71 = vector.shape_cast %23 : vector<1x512xi1> to vector<1x512xi1>
    %72 = vector.broadcast %71 : vector<1x512xi1> to vector<8x512xi1>
    %73 = vector.broadcast %cst_35 : bf16 to vector<8x512xbf16>
    %74 = arith.select %72, %70, %73 : vector<8x512xi1>, vector<8x512xbf16>
    %c0_36 = arith.constant 0 : index
    %c144 = arith.constant 144 : index
    %75 = vector.load %arg10[%c0_36, %c144] : memref<8x1024xbf16, #tpu.memory_space<vmem>>, vector<8x256xbf16>
    %c0_37 = arith.constant 0 : index
    %c656 = arith.constant 656 : index
    %76 = vector.load %arg10[%c0_37, %c656] : memref<8x1024xbf16, #tpu.memory_space<vmem>>, vector<8x256xbf16>
    %77 = tpu.concatenate %75, %76 in 1 : vector<8x256xbf16>, vector<8x256xbf16> -> vector<8x512xbf16>
    %c0_38 = arith.constant 0 : index
    %c145 = arith.constant 145 : index
    %78 = vector.load %arg10[%c0_38, %c145] : memref<8x1024xbf16, #tpu.memory_space<vmem>>, vector<8x256xbf16>
    %c0_39 = arith.constant 0 : index
    %c657 = arith.constant 657 : index
    %79 = vector.load %arg10[%c0_39, %c657] : memref<8x1024xbf16, #tpu.memory_space<vmem>>, vector<8x256xbf16>
    %80 = tpu.concatenate %78, %79 in 1 : vector<8x256xbf16>, vector<8x256xbf16> -> vector<8x512xbf16>
    %cst_40 = arith.constant 0.000000e+00 : bf16
    %81 = vector.shape_cast %25 : vector<1x512xi1> to vector<1x512xi1>
    %82 = vector.broadcast %81 : vector<1x512xi1> to vector<8x512xi1>
    %83 = vector.broadcast %cst_40 : bf16 to vector<8x512xbf16>
    %84 = arith.select %82, %80, %83 : vector<8x512xi1>, vector<8x512xbf16>
    %85 = tpu.concatenate %40, %43, %50, %57, %60, %67, %74, %77, %84 in 0 : vector<8x512xbf16>, vector<8x512xbf16>, vector<8x512xbf16>, vector<8x512xbf16>, vector<8x512xbf16>, vector<8x512xbf16>, vector<8x512xbf16>, vector<8x512xbf16>, vector<8x512xbf16> -> vector<72x512xbf16>
    %c0_41 = arith.constant 0 : index
    %c0_42 = arith.constant 0 : index
    %86 = vector.load %arg2[%c0_41, %c0_42] : memref<8x72xbf16, #tpu.memory_space<vmem>>, vector<8x72xbf16>
    %cst_43 = arith.constant dense<0.000000e+00> : vector<8x512xf32>
    %87 = tpu.matmul %86, %85, %cst_43 {dimension_numbers = #tpu.dot_dimension_numbers<[1], [0], [0], [1], [0, 0, 1, 1], [], []>} : vector<8x72xbf16>, vector<72x512xbf16>, vector<8x512xf32> -> vector<8x512xf32>
    %c0_44 = arith.constant 0 : index
    %c0_45 = arith.constant 0 : index
    %88 = vector.load %arg3[%c0_44, %c0_45] : memref<8x1xf32, #tpu.memory_space<vmem>>, vector<8x1xf32>
    %89 = vector.broadcast %88 : vector<8x1xf32> to vector<8x512xf32>
    %90 = arith.mulf %87, %89 : vector<8x512xf32>
    %c0_46 = arith.constant 0 : index
    %c0_47 = arith.constant 0 : index
    %91 = vector.load %arg4[%c0_46, %c0_47] : memref<8x1xf32, #tpu.memory_space<vmem>>, vector<8x1xf32>
    %92 = vector.broadcast %91 : vector<8x1xf32> to vector<8x512xf32>
    %93 = arith.addf %90, %92 : vector<8x512xf32>
    %cst_48 = arith.constant 0.000000e+00 : f32
    %94 = vector.broadcast %cst_48 : f32 to vector<8x512xf32>
    %95 = arith.maximumf %93, %94 : vector<8x512xf32>
    %96 = vector.extract_strided_slice %95 {offsets = [0, 0], sizes = [8, 256], strides = [1, 1]} : vector<8x512xf32> to vector<8x256xf32>
    %97 = arith.truncf %96 : vector<8x256xf32> to vector<8x256xbf16>
    %c0_49 = arith.constant 0 : index
    %c128_50 = arith.constant 128 : index
    %98 = vector.load %arg10[%c0_49, %c128_50] : memref<8x1024xbf16, #tpu.memory_space<vmem>>, vector<8x256xbf16>
    tpu.vector_store %arg10[%c0_49, %c128_50], %97 {strides = array<i32>} : memref<8x1024xbf16, #tpu.memory_space<vmem>>, vector<8x256xbf16>,
    %99 = vector.extract_strided_slice %95 {offsets = [0, 256], sizes = [8, 256], strides = [1, 1]} : vector<8x512xf32> to vector<8x256xf32>
    %100 = arith.truncf %99 : vector<8x256xf32> to vector<8x256xbf16>
    %c0_51 = arith.constant 0 : index
    %c640_52 = arith.constant 640 : index
    %101 = vector.load %arg10[%c0_51, %c640_52] : memref<8x1024xbf16, #tpu.memory_space<vmem>>, vector<8x256xbf16>
    tpu.vector_store %arg10[%c0_51, %c640_52], %100 {strides = array<i32>} : memref<8x1024xbf16, #tpu.memory_space<vmem>>, vector<8x256xbf16>,
    %c0_53 = arith.constant 0 : index
    %c111_54 = arith.constant 111 : index
    %102 = vector.load %arg10[%c0_53, %c111_54] : memref<8x1024xbf16, #tpu.memory_space<vmem>>, vector<8x256xbf16>
    %c0_55 = arith.constant 0 : index
    %c623_56 = arith.constant 623 : index
    %103 = vector.load %arg10[%c0_55, %c623_56] : memref<8x1024xbf16, #tpu.memory_space<vmem>>, vector<8x256xbf16>
    %104 = tpu.concatenate %102, %103 in 1 : vector<8x256xbf16>, vector<8x256xbf16> -> vector<8x512xbf16>
    %cst_57 = arith.constant 0.000000e+00 : bf16
    %105 = vector.shape_cast %23 : vector<1x512xi1> to vector<1x512xi1>
    %106 = vector.broadcast %105 : vector<1x512xi1> to vector<8x512xi1>
    %107 = vector.broadcast %cst_57 : bf16 to vector<8x512xbf16>
    %108 = arith.select %106, %104, %107 : vector<8x512xi1>, vector<8x512xbf16>
    %c0_58 = arith.constant 0 : index
    %c112_59 = arith.constant 112 : index
    %109 = vector.load %arg10[%c0_58, %c112_59] : memref<8x1024xbf16, #tpu.memory_space<vmem>>, vector<8x256xbf16>
    %c0_60 = arith.constant 0 : index
    %c624_61 = arith.constant 624 : index
    %110 = vector.load %arg10[%c0_60, %c624_61] : memref<8x1024xbf16, #tpu.memory_space<vmem>>, vector<8x256xbf16>
    %111 = tpu.concatenate %109, %110 in 1 : vector<8x256xbf16>, vector<8x256xbf16> -> vector<8x512xbf16>
    %c0_62 = arith.constant 0 : index
    %c113_63 = arith.constant 113 : index
    %112 = vector.load %arg10[%c0_62, %c113_63] : memref<8x1024xbf16, #tpu.memory_space<vmem>>, vector<8x256xbf16>
    %c0_64 = arith.constant 0 : index
    %c625_65 = arith.constant 625 : index
    %113 = vector.load %arg10[%c0_64, %c625_65] : memref<8x1024xbf16, #tpu.memory_space<vmem>>, vector<8x256xbf16>
    %114 = tpu.concatenate %112, %113 in 1 : vector<8x256xbf16>, vector<8x256xbf16> -> vector<8x512xbf16>
    %cst_66 = arith.constant 0.000000e+00 : bf16
    %115 = vector.shape_cast %25 : vector<1x512xi1> to vector<1x512xi1>
    %116 = vector.broadcast %115 : vector<1x512xi1> to vector<8x512xi1>
    %117 = vector.broadcast %cst_66 : bf16 to vector<8x512xbf16>
    %118 = arith.select %116, %114, %117 : vector<8x512xi1>, vector<8x512xbf16>
    %c0_67 = arith.constant 0 : index
    %c127_68 = arith.constant 127 : index
    %119 = vector.load %arg10[%c0_67, %c127_68] : memref<8x1024xbf16, #tpu.memory_space<vmem>>, vector<8x256xbf16>
    %c0_69 = arith.constant 0 : index
    %c639_70 = arith.constant 639 : index
    %120 = vector.load %arg10[%c0_69, %c639_70] : memref<8x1024xbf16, #tpu.memory_space<vmem>>, vector<8x256xbf16>
    %121 = tpu.concatenate %119, %120 in 1 : vector<8x256xbf16>, vector<8x256xbf16> -> vector<8x512xbf16>
    %cst_71 = arith.constant 0.000000e+00 : bf16
    %122 = vector.shape_cast %23 : vector<1x512xi1> to vector<1x512xi1>
    %123 = vector.broadcast %122 : vector<1x512xi1> to vector<8x512xi1>
    %124 = vector.broadcast %cst_71 : bf16 to vector<8x512xbf16>
    %125 = arith.select %123, %121, %124 : vector<8x512xi1>, vector<8x512xbf16>
    %c0_72 = arith.constant 0 : index
    %c128_73 = arith.constant 128 : index
    %126 = vector.load %arg10[%c0_72, %c128_73] : memref<8x1024xbf16, #tpu.memory_space<vmem>>, vector<8x256xbf16>
    %c0_74 = arith.constant 0 : index
    %c640_75 = arith.constant 640 : index
    %127 = vector.load %arg10[%c0_74, %c640_75] : memref<8x1024xbf16, #tpu.memory_space<vmem>>, vector<8x256xbf16>
    %128 = tpu.concatenate %126, %127 in 1 : vector<8x256xbf16>, vector<8x256xbf16> -> vector<8x512xbf16>
    %c0_76 = arith.constant 0 : index
    %c129_77 = arith.constant 129 : index
    %129 = vector.load %arg10[%c0_76, %c129_77] : memref<8x1024xbf16, #tpu.memory_space<vmem>>, vector<8x256xbf16>
    %c0_78 = arith.constant 0 : index
    %c641_79 = arith.constant 641 : index
    %130 = vector.load %arg10[%c0_78, %c641_79] : memref<8x1024xbf16, #tpu.memory_space<vmem>>, vector<8x256xbf16>
    %131 = tpu.concatenate %129, %130 in 1 : vector<8x256xbf16>, vector<8x256xbf16> -> vector<8x512xbf16>
    %cst_80 = arith.constant 0.000000e+00 : bf16
    %132 = vector.shape_cast %25 : vector<1x512xi1> to vector<1x512xi1>
    %133 = vector.broadcast %132 : vector<1x512xi1> to vector<8x512xi1>
    %134 = vector.broadcast %cst_80 : bf16 to vector<8x512xbf16>
    %135 = arith.select %133, %131, %134 : vector<8x512xi1>, vector<8x512xbf16>
    %c0_81 = arith.constant 0 : index
    %c143_82 = arith.constant 143 : index
    %136 = vector.load %arg10[%c0_81, %c143_82] : memref<8x1024xbf16, #tpu.memory_space<vmem>>, vector<8x256xbf16>
    %c0_83 = arith.constant 0 : index
    %c655_84 = arith.constant 655 : index
    %137 = vector.load %arg10[%c0_83, %c655_84] : memref<8x1024xbf16, #tpu.memory_space<vmem>>, vector<8x256xbf16>
    %138 = tpu.concatenate %136, %137 in 1 : vector<8x256xbf16>, vector<8x256xbf16> -> vector<8x512xbf16>
    %cst_85 = arith.constant 0.000000e+00 : bf16
    %139 = vector.shape_cast %23 : vector<1x512xi1> to vector<1x512xi1>
    %140 = vector.broadcast %139 : vector<1x512xi1> to vector<8x512xi1>
    %141 = vector.broadcast %cst_85 : bf16 to vector<8x512xbf16>
    %142 = arith.select %140, %138, %141 : vector<8x512xi1>, vector<8x512xbf16>
    %c0_86 = arith.constant 0 : index
    %c144_87 = arith.constant 144 : index
    %143 = vector.load %arg10[%c0_86, %c144_87] : memref<8x1024xbf16, #tpu.memory_space<vmem>>, vector<8x256xbf16>
    %c0_88 = arith.constant 0 : index
    %c656_89 = arith.constant 656 : index
    %144 = vector.load %arg10[%c0_88, %c656_89] : memref<8x1024xbf16, #tpu.memory_space<vmem>>, vector<8x256xbf16>
    %145 = tpu.concatenate %143, %144 in 1 : vector<8x256xbf16>, vector<8x256xbf16> -> vector<8x512xbf16>
    %c0_90 = arith.constant 0 : index
    %c145_91 = arith.constant 145 : index
    %146 = vector.load %arg10[%c0_90, %c145_91] : memref<8x1024xbf16, #tpu.memory_space<vmem>>, vector<8x256xbf16>
    %c0_92 = arith.constant 0 : index
    %c657_93 = arith.constant 657 : index
    %147 = vector.load %arg10[%c0_92, %c657_93] : memref<8x1024xbf16, #tpu.memory_space<vmem>>, vector<8x256xbf16>
    %148 = tpu.concatenate %146, %147 in 1 : vector<8x256xbf16>, vector<8x256xbf16> -> vector<8x512xbf16>
    %cst_94 = arith.constant 0.000000e+00 : bf16
    %149 = vector.shape_cast %25 : vector<1x512xi1> to vector<1x512xi1>
    %150 = vector.broadcast %149 : vector<1x512xi1> to vector<8x512xi1>
    %151 = vector.broadcast %cst_94 : bf16 to vector<8x512xbf16>
    %152 = arith.select %150, %148, %151 : vector<8x512xi1>, vector<8x512xbf16>
    %153 = tpu.concatenate %108, %111, %118, %125, %128, %135, %142, %145, %152 in 0 : vector<8x512xbf16>, vector<8x512xbf16>, vector<8x512xbf16>, vector<8x512xbf16>, vector<8x512xbf16>, vector<8x512xbf16>, vector<8x512xbf16>, vector<8x512xbf16>, vector<8x512xbf16> -> vector<72x512xbf16>
    %c0_95 = arith.constant 0 : index
    %c0_96 = arith.constant 0 : index
    %154 = vector.load %arg5[%c0_95, %c0_96] : memref<8x72xbf16, #tpu.memory_space<vmem>>, vector<8x72xbf16>
    %cst_97 = arith.constant dense<0.000000e+00> : vector<8x512xf32>
    %155 = tpu.matmul %154, %153, %cst_97 {dimension_numbers = #tpu.dot_dimension_numbers<[1], [0], [0], [1], [0, 0, 1, 1], [], []>} : vector<8x72xbf16>, vector<72x512xbf16>, vector<8x512xf32> -> vector<8x512xf32>
    %c0_98 = arith.constant 0 : index
    %c0_99 = arith.constant 0 : index
    %156 = vector.load %arg6[%c0_98, %c0_99] : memref<8x1xf32, #tpu.memory_space<vmem>>, vector<8x1xf32>
    %157 = vector.broadcast %156 : vector<8x1xf32> to vector<8x512xf32>
    %158 = arith.mulf %155, %157 : vector<8x512xf32>
    %c0_100 = arith.constant 0 : index
    %c0_101 = arith.constant 0 : index
    %159 = vector.load %arg7[%c0_100, %c0_101] : memref<8x1xf32, #tpu.memory_space<vmem>>, vector<8x1xf32>
    %160 = vector.broadcast %159 : vector<8x1xf32> to vector<8x512xf32>
    %161 = arith.addf %158, %160 : vector<8x512xf32>
    %162 = vector.extract_strided_slice %161 {offsets = [0, 0], sizes = [8, 256], strides = [1, 1]} : vector<8x512xf32> to vector<8x256xf32>
    %cst_102 = arith.constant dense<0.000000e+00> : vector<8xf32>
    %163 = vector.multi_reduction <add>, %162, %cst_102 [1] : vector<8x256xf32> to vector<8xf32>
    %164 = vector.shape_cast %163 : vector<8xf32> to vector<8x1xf32>
    %cst_103 = arith.constant 2.560000e+02 : f32
    %165 = vector.broadcast %cst_103 : f32 to vector<8x1xf32>
    %166 = arith.divf %164, %165 : vector<8x1xf32>
    %167 = vector.extract_strided_slice %161 {offsets = [0, 256], sizes = [8, 256], strides = [1, 1]} : vector<8x512xf32> to vector<8x256xf32>
    %cst_104 = arith.constant dense<0.000000e+00> : vector<8xf32>
    %168 = vector.multi_reduction <add>, %167, %cst_104 [1] : vector<8x256xf32> to vector<8xf32>
    %169 = vector.shape_cast %168 : vector<8xf32> to vector<8x1xf32>
    %cst_105 = arith.constant 2.560000e+02 : f32
    %170 = vector.broadcast %cst_105 : f32 to vector<8x1xf32>
    %171 = arith.divf %169, %170 : vector<8x1xf32>
    %172 = tpu.concatenate %166, %171 in 1 : vector<8x1xf32>, vector<8x1xf32> -> vector<8x2xf32>
    %c0_106 = arith.constant 0 : index
    %c1_107 = arith.constant 1 : index
    %173 = vector.load %arg8[%c0_106, %c1_107] : memref<8x3xf32, #tpu.memory_space<vmem>>, vector<8x1xf32>
    %174 = vector.broadcast %173 : vector<8x1xf32> to vector<8x2xf32>
    %175 = arith.mulf %174, %172 : vector<8x2xf32>
    %cst_108 = arith.constant 0.000000e+00 : f32
    %176 = vector.broadcast %cst_108 : f32 to vector<1x2xf32>
    %177 = vector.extract_strided_slice %172 {offsets = [0, 0], sizes = [7, 2], strides = [1, 1]} : vector<8x2xf32> to vector<7x2xf32>
    %178 = tpu.concatenate %176, %177 in 0 : vector<1x2xf32>, vector<7x2xf32> -> vector<8x2xf32>
    %c0_109 = arith.constant 0 : index
    %c0_110 = arith.constant 0 : index
    %179 = vector.load %arg8[%c0_109, %c0_110] : memref<8x3xf32, #tpu.memory_space<vmem>>, vector<8x1xf32>
    %180 = vector.broadcast %179 : vector<8x1xf32> to vector<8x2xf32>
    %181 = arith.mulf %180, %178 : vector<8x2xf32>
    %182 = arith.addf %175, %181 : vector<8x2xf32>
    %183 = vector.extract_strided_slice %172 {offsets = [1, 0], sizes = [7, 2], strides = [1, 1]} : vector<8x2xf32> to vector<7x2xf32>
    %cst_111 = arith.constant 0.000000e+00 : f32
    %184 = vector.broadcast %cst_111 : f32 to vector<1x2xf32>
    %185 = tpu.concatenate %183, %184 in 0 : vector<7x2xf32>, vector<1x2xf32> -> vector<8x2xf32>
    %c0_112 = arith.constant 0 : index
    %c2 = arith.constant 2 : index
    %186 = vector.load %arg8[%c0_112, %c2] : memref<8x3xf32, #tpu.memory_space<vmem>>, vector<8x1xf32>
    %187 = vector.broadcast %186 : vector<8x1xf32> to vector<8x2xf32>
    %188 = arith.mulf %187, %185 : vector<8x2xf32>
    %189 = arith.addf %182, %188 : vector<8x2xf32>
    %190 = arith.negf %189 : vector<8x2xf32>
    %191 = math.exp %190 : vector<8x2xf32>
    %cst_113 = arith.constant 1.000000e+00 : f32
    %192 = vector.broadcast %cst_113 : f32 to vector<8x2xf32>
    %193 = arith.addf %192, %191 : vector<8x2xf32>
    %194 = arith.divf %192, %193 : vector<8x2xf32>
    %195 = vector.extract_strided_slice %161 {offsets = [0, 0], sizes = [8, 256], strides = [1, 1]} : vector<8x512xf32> to vector<8x256xf32>
    %196 = vector.extract_strided_slice %194 {offsets = [0, 0], sizes = [8, 1], strides = [1, 1]} : vector<8x2xf32> to vector<8x1xf32>
    %197 = vector.broadcast %196 : vector<8x1xf32> to vector<8x256xf32>
    %198 = arith.mulf %195, %197 : vector<8x256xf32>
    %c0_114 = arith.constant 0 : index
    %c0_115 = arith.constant 0 : index
    %c0_116 = arith.constant 0 : index
    %199 = vector.load %arg1[%c0_114, %c0_115, %c0_116] : memref<2x8x256xf32, #tpu.memory_space<vmem>>, vector<1x8x256xf32>
    %200 = vector.shape_cast %199 : vector<1x8x256xf32> to vector<8x256xf32>
    %201 = arith.addf %198, %200 : vector<8x256xf32>
    %cst_117 = arith.constant 0.000000e+00 : f32
    %202 = vector.broadcast %cst_117 : f32 to vector<8x256xf32>
    %203 = arith.maximumf %201, %202 : vector<8x256xf32>
    %c0_118 = arith.constant 0 : index
    %c0_119 = arith.constant 0 : index
    %c0_120 = arith.constant 0 : index
    %204 = vector.load %arg9[%c0_118, %c0_119, %c0_120] : memref<2x8x256xf32, #tpu.memory_space<vmem>>, vector<1x8x256xf32>
    %205 = vector.shape_cast %204 : vector<1x8x256xf32> to vector<8x256xf32>
    %206 = vector.shape_cast %203 : vector<8x256xf32> to vector<1x8x256xf32>
    tpu.vector_store %arg9[%c0_118, %c0_119, %c0_120], %206 {strides = array<i32>} : memref<2x8x256xf32, #tpu.memory_space<vmem>>, vector<1x8x256xf32>,
    %207 = vector.extract_strided_slice %161 {offsets = [0, 256], sizes = [8, 256], strides = [1, 1]} : vector<8x512xf32> to vector<8x256xf32>
    %208 = vector.extract_strided_slice %194 {offsets = [0, 1], sizes = [8, 1], strides = [1, 1]} : vector<8x2xf32> to vector<8x1xf32>
    %209 = vector.broadcast %208 : vector<8x1xf32> to vector<8x256xf32>
    %210 = arith.mulf %207, %209 : vector<8x256xf32>
    %c1_121 = arith.constant 1 : index
    %c0_122 = arith.constant 0 : index
    %c0_123 = arith.constant 0 : index
    %211 = vector.load %arg1[%c1_121, %c0_122, %c0_123] : memref<2x8x256xf32, #tpu.memory_space<vmem>>, vector<1x8x256xf32>
    %212 = vector.shape_cast %211 : vector<1x8x256xf32> to vector<8x256xf32>
    %213 = arith.addf %210, %212 : vector<8x256xf32>
    %cst_124 = arith.constant 0.000000e+00 : f32
    %214 = vector.broadcast %cst_124 : f32 to vector<8x256xf32>
    %215 = arith.maximumf %213, %214 : vector<8x256xf32>
    %c1_125 = arith.constant 1 : index
    %c0_126 = arith.constant 0 : index
    %c0_127 = arith.constant 0 : index
    %216 = vector.load %arg9[%c1_125, %c0_126, %c0_127] : memref<2x8x256xf32, #tpu.memory_space<vmem>>, vector<1x8x256xf32>
    %217 = vector.shape_cast %216 : vector<1x8x256xf32> to vector<8x256xf32>
    %218 = vector.shape_cast %215 : vector<8x256xf32> to vector<1x8x256xf32>
    tpu.vector_store %arg9[%c1_125, %c0_126, %c0_127], %218 {strides = array<i32>} : memref<2x8x256xf32, #tpu.memory_space<vmem>>, vector<1x8x256xf32>,
    return
  }
  func.func @transform_0(%arg0: i32) -> (i32, i32, i32) {
    %c0_i32 = arith.constant 0 : i32
    %c0_i32_0 = arith.constant 0 : i32
    %c0_i32_1 = arith.constant 0 : i32
    return %arg0, %c0_i32, %c0_i32_0 : i32, i32, i32
  }
  func.func @transform_1(%arg0: i32) -> (i32, i32) {
    %c0_i32 = arith.constant 0 : i32
    %c0_i32_0 = arith.constant 0 : i32
    %c0_i32_1 = arith.constant 0 : i32
    return %c0_i32, %c0_i32_0 : i32, i32
  }
  func.func @transform_2(%arg0: i32) -> (i32, i32) {
    %c0_i32 = arith.constant 0 : i32
    %c0_i32_0 = arith.constant 0 : i32
    %c0_i32_1 = arith.constant 0 : i32
    return %c0_i32, %c0_i32_0 : i32, i32
  }
  func.func @transform_3(%arg0: i32) -> (i32, i32) {
    %c0_i32 = arith.constant 0 : i32
    %c0_i32_0 = arith.constant 0 : i32
    %c0_i32_1 = arith.constant 0 : i32
    return %c0_i32, %c0_i32_0 : i32, i32
  }
  func.func @transform_4(%arg0: i32) -> (i32, i32) {
    %c0_i32 = arith.constant 0 : i32
    %c0_i32_0 = arith.constant 0 : i32
    %c0_i32_1 = arith.constant 0 : i32
    return %c0_i32, %c0_i32_0 : i32, i32
  }
  func.func @transform_5(%arg0: i32) -> (i32, i32) {
    %c0_i32 = arith.constant 0 : i32
    %c0_i32_0 = arith.constant 0 : i32
    %c0_i32_1 = arith.constant 0 : i32
    return %c0_i32, %c0_i32_0 : i32, i32
  }
  func.func @transform_6(%arg0: i32) -> (i32, i32) {
    %c0_i32 = arith.constant 0 : i32
    %c0_i32_0 = arith.constant 0 : i32
    %c0_i32_1 = arith.constant 0 : i32
    return %c0_i32, %c0_i32_0 : i32, i32
  }
  func.func @transform_7(%arg0: i32) -> (i32, i32) {
    %c0_i32 = arith.constant 0 : i32
    %c0_i32_0 = arith.constant 0 : i32
    %c0_i32_1 = arith.constant 0 : i32
    return %c0_i32, %c0_i32_0 : i32, i32
  }
  func.func @transform_8(%arg0: i32) -> (i32, i32, i32) {
    %c0_i32 = arith.constant 0 : i32
    %c0_i32_0 = arith.constant 0 : i32
    %c0_i32_1 = arith.constant 0 : i32
    return %arg0, %c0_i32, %c0_i32_0 : i32, i32, i32
  }
}

</mosaic_0001>

<llo_original>
// kernel: tpu_custom_call.1
$region0: #{tpu_custom_call.1}
  #allocation0 [shape = 'u32[]', space=smem, size = 0x4, offset = 0x4, fixed_abs, tag = 'smem constant byte address 0x4 - core index']
  #allocation1 [shape = 'u32[144,128]{1,0:T(1,128)}', space=vmem, size = 0x12000, scoped, tag = 'internal scratch']
  #allocation2 [shape = 'bf16[8,1024]{1,0:T(8,128)(2,1)}', space=vmem, size = 0x4000, scoped, tag = 'scratch operand']
  %s0 = inlined_call_operand.hbm [shape: f32[2,8,256], index: 0, kind: input, shape index: {}]
  %s1 = inlined_call_operand.hbm [shape: bf16[8,72], index: 1, kind: input, shape index: {}]
  %s2 = inlined_call_operand.hbm [shape: f32[8,1], index: 2, kind: input, shape index: {}]
  %s3 = inlined_call_operand.hbm [shape: f32[8,1], index: 3, kind: input, shape index: {}]
  %s4 = inlined_call_operand.hbm [shape: bf16[8,72], index: 4, kind: input, shape index: {}]
  %s5 = inlined_call_operand.hbm [shape: f32[8,1], index: 5, kind: input, shape index: {}]
  %s6 = inlined_call_operand.hbm [shape: f32[8,1], index: 6, kind: input, shape index: {}]
  %s7 = inlined_call_operand.hbm [shape: f32[8,3], index: 7, kind: input, shape index: {}]
  %s8 = inlined_call_operand.hbm [shape: f32[2,8,256], index: 8, kind: output, shape index: {}]
  %s9 = sld [smem:[#allocation0]]
  $region74: #{tpu_custom_call.1} parent=0
    _
  %s11 = ssub.s32 1, %s9
  %s12 = scalar_select 0, %s11, %s9
  $region1: #{tpu_custom_call.1} parent=0
    #allocation3 [shape = 'u8[16384]{0}', space=vmem, size = 0x4000, scoped, tag = 'input window, operand 0, single buffered']
    #allocation4 [shape = 's32[1]{0}', space=sflag, size = 0x4, scoped, tag = 'scoped memory for tpu_custom_call.1']
    #allocation5 [shape = 's32[1]{0}', space=sflag, size = 0x4, scoped, tag = 'scoped memory for tpu_custom_call.1']
    #allocation6 [shape = 'u8[2048]{0}', space=vmem, size = 0x800, scoped, tag = 'input window, operand 1, single buffered']
    #allocation7 [shape = 's32[1]{0}', space=sflag, size = 0x4, scoped, tag = 'scoped memory for tpu_custom_call.1']
    #allocation8 [shape = 'u8[4096]{0}', space=vmem, size = 0x1000, scoped, tag = 'input window, operand 2, single buffered']
    #allocation9 [shape = 'u8[4096]{0}', space=vmem, size = 0x1000, scoped, tag = 'input window, operand 3, single buffered']
    #allocation10 [shape = 's32[1]{0}', space=sflag, size = 0x4, scoped, tag = 'scoped memory for tpu_custom_call.1']
    #allocation11 [shape = 'u8[2048]{0}', space=vmem, size = 0x800, scoped, tag = 'input window, operand 4, single buffered']
    #allocation12 [shape = 'u8[4096]{0}', space=vmem, size = 0x1000, scoped, tag = 'input window, operand 5, single buffered']
    #allocation13 [shape = 's32[1]{0}', space=sflag, size = 0x4, scoped, tag = 'scoped memory for tpu_custom_call.1']
    #allocation14 [shape = 'u8[4096]{0}', space=vmem, size = 0x1000, scoped, tag = 'input window, operand 6, single buffered']
    #allocation15 [shape = 'u8[4096]{0}', space=vmem, size = 0x1000, scoped, tag = 'input window, operand 7, single buffered']
    #allocation16 [shape = 's32[1]{0}', space=sflag, size = 0x4, scoped, tag = 'scoped memory for tpu_custom_call.1']
    #allocation17 [shape = 'u8[16384]{0}', space=vmem, size = 0x4000, scoped, tag = 'output window, operand 0, single buffered']
    %13 = vsyncpa [#allocation4], 0
    %14 = vsyncpa [#allocation7], 0
    %15 = vsyncpa [#allocation10], 0
    %16 = vsyncpa [#allocation13], 0
    %17 = vsyncpa [#allocation16], 0
    %18 = vsyncpa [#allocation5], 0
    // Predicated region
    $region2: #{tpu_custom_call.1} parent=1 // pred_check
      _
    $region3: #{tpu_custom_call.1} parent=1 // pred_check_branch
      %20 = sbr.rel (0) target = $region5
    $region4: #{tpu_custom_call.1} parent=1 // pred_region
      %s22 = ssub.s32 512, 512
      %23 = vsyncadd [#allocation4], %s22
      %s24 = sshll.u32 [#allocation3], 4
      %s25 = int_to_ptr.vmem [resolvable:$true] %s24
      %30 = dma.hbm_to_vmem [thread:$0]  %s0, 512, %s25, [#allocation4], 256, 256, 16
    $region5: #{tpu_custom_call.1} parent=1 // pred_fallthru
      _
    // Predicated region
    $region6: #{tpu_custom_call.1} parent=1 // pred_check
      _
    $region7: #{tpu_custom_call.1} parent=1 // pred_check_branch
      %32 = sbr.rel (0) target = $region9
    $region8: #{tpu_custom_call.1} parent=1 // pred_region
      %s34 = ssub.s32 64, 64
      %35 = vsyncadd [#allocation7], %s34
      %s37 = sshll.u32 [#allocation6], 4
      %s38 = int_to_ptr.vmem [resolvable:$true] %s37
      %40 = dma.hbm_to_vmem [thread:$0]  %s1, 64, %s38, [#allocation7]
    $region9: #{tpu_custom_call.1} parent=1 // pred_fallthru
      _
    // Predicated region
    $region10: #{tpu_custom_call.1} parent=1 // pred_check
      _
    $region11: #{tpu_custom_call.1} parent=1 // pred_check_branch
      %42 = sbr.rel (0) target = $region13
    $region12: #{tpu_custom_call.1} parent=1 // pred_region
      %s44 = ssub.s32 128, 128
      %45 = vsyncadd [#allocation7], %s44
      %s47 = sshll.u32 [#allocation8], 4
      %s48 = int_to_ptr.vmem [resolvable:$true] %s47
      %50 = dma.hbm_to_vmem [thread:$0]  %s2, 128, %s48, [#allocation7]
    $region13: #{tpu_custom_call.1} parent=1 // pred_fallthru
      _
    // Predicated region
    $region14: #{tpu_custom_call.1} parent=1 // pred_check
      _
    $region15: #{tpu_custom_call.1} parent=1 // pred_check_branch
      %52 = sbr.rel (0) target = $region17
    $region16: #{tpu_custom_call.1} parent=1 // pred_region
      %s54 = ssub.s32 128, 128
      %55 = vsyncadd [#allocation10], %s54
      %s57 = sshll.u32 [#allocation9], 4
      %s58 = int_to_ptr.vmem [resolvable:$true] %s57
      %60 = dma.hbm_to_vmem [thread:$0]  %s3, 128, %s58, [#allocation10]
    $region17: #{tpu_custom_call.1} parent=1 // pred_fallthru
      _
    // Predicated region
    $region18: #{tpu_custom_call.1} parent=1 // pred_check
      _
    $region19: #{tpu_custom_call.1} parent=1 // pred_check_branch
      %62 = sbr.rel (0) target = $region21
    $region20: #{tpu_custom_call.1} parent=1 // pred_region
      %s64 = ssub.s32 64, 64
      %65 = vsyncadd [#allocation10], %s64
      %s67 = sshll.u32 [#allocation11], 4
      %s68 = int_to_ptr.vmem [resolvable:$true] %s67
      %70 = dma.hbm_to_vmem [thread:$0]  %s4, 64, %s68, [#allocation10]
    $region21: #{tpu_custom_call.1} parent=1 // pred_fallthru
      _
    // Predicated region
    $region22: #{tpu_custom_call.1} parent=1 // pred_check
      _
    $region23: #{tpu_custom_call.1} parent=1 // pred_check_branch
      %72 = sbr.rel (0) target = $region25
    $region24: #{tpu_custom_call.1} parent=1 // pred_region
      %s74 = ssub.s32 128, 128
      %75 = vsyncadd [#allocation13], %s74
      %s77 = sshll.u32 [#allocation12], 4
      %s78 = int_to_ptr.vmem [resolvable:$true] %s77
      %80 = dma.hbm_to_vmem [thread:$0]  %s5, 128, %s78, [#allocation13]
    $region25: #{tpu_custom_call.1} parent=1 // pred_fallthru
      _
    // Predicated region
    $region26: #{tpu_custom_call.1} parent=1 // pred_check
      _
    $region27: #{tpu_custom_call.1} parent=1 // pred_check_branch
      %82 = sbr.rel (0) target = $region29
    $region28: #{tpu_custom_call.1} parent=1 // pred_region
      %s84 = ssub.s32 128, 128
      %85 = vsyncadd [#allocation13], %s84
      %s87 = sshll.u32 [#allocation14], 4
      %s88 = int_to_ptr.vmem [resolvable:$true] %s87
      %90 = dma.hbm_to_vmem [thread:$0]  %s6, 128, %s88, [#allocation13]
    $region29: #{tpu_custom_call.1} parent=1 // pred_fallthru
      _
    // Predicated region
    $region30: #{tpu_custom_call.1} parent=1 // pred_check
      _
    $region31: #{tpu_custom_call.1} parent=1 // pred_check_branch
      %92 = sbr.rel (0) target = $region33
    $region32: #{tpu_custom_call.1} parent=1 // pred_region
      %s94 = ssub.s32 128, 128
      %95 = vsyncadd [#allocation16], %s94
      %s97 = sshll.u32 [#allocation15], 4
      %s98 = int_to_ptr.vmem [resolvable:$true] %s97
      %100 = dma.hbm_to_vmem [thread:$0]  %s7, 128, %s98, [#allocation16]
    $region33: #{tpu_custom_call.1} parent=1 // pred_fallthru
      _
    // Predicated region
    $region34: #{tpu_custom_call.1} parent=1 // pred_check
      _
    $region35: #{tpu_custom_call.1} parent=1 // pred_check_branch
      %102 = sbr.rel (0) target = $region37
    $region36: #{tpu_custom_call.1} parent=1 // pred_region
      %103 = dma.done [#allocation4], 512
    $region37: #{tpu_custom_call.1} parent=1 // pred_fallthru
      _
    // Predicated region
    $region38: #{tpu_custom_call.1} parent=1 // pred_check
      _
    $region39: #{tpu_custom_call.1} parent=1 // pred_check_branch
      %105 = sbr.rel (0) target = $region41
    $region40: #{tpu_custom_call.1} parent=1 // pred_region
      %106 = dma.done [#allocation7], 64
    $region41: #{tpu_custom_call.1} parent=1 // pred_fallthru
      _
    // Predicated region
    $region42: #{tpu_custom_call.1} parent=1 // pred_check
      _
    $region43: #{tpu_custom_call.1} parent=1 // pred_check_branch
      %108 = sbr.rel (0) target = $region45
    $region44: #{tpu_custom_call.1} parent=1 // pred_region
      %109 = dma.done [#allocation7], 128
    $region45: #{tpu_custom_call.1} parent=1 // pred_fallthru
      _
    // Predicated region
    $region46: #{tpu_custom_call.1} parent=1 // pred_check
      _
    $region47: #{tpu_custom_call.1} parent=1 // pred_check_branch
      %111 = sbr.rel (0) target = $region49
    $region48: #{tpu_custom_call.1} parent=1 // pred_region
      %112 = dma.done [#allocation10], 128
    $region49: #{tpu_custom_call.1} parent=1 // pred_fallthru
      _
    // Predicated region
    $region50: #{tpu_custom_call.1} parent=1 // pred_check
      _
    $region51: #{tpu_custom_call.1} parent=1 // pred_check_branch
      %114 = sbr.rel (0) target = $region53
    $region52: #{tpu_custom_call.1} parent=1 // pred_region
      %115 = dma.done [#allocation10], 64
    $region53: #{tpu_custom_call.1} parent=1 // pred_fallthru
      _
    // Predicated region
    $region54: #{tpu_custom_call.1} parent=1 // pred_check
      _
    $region55: #{tpu_custom_call.1} parent=1 // pred_check_branch
      %117 = sbr.rel (0) target = $region57
    $region56: #{tpu_custom_call.1} parent=1 // pred_region
      %118 = dma.done [#allocation13], 128
    $region57: #{tpu_custom_call.1} parent=1 // pred_fallthru
      _
    // Predicated region
    $region58: #{tpu_custom_call.1} parent=1 // pred_check
      _
    $region59: #{tpu_custom_call.1} parent=1 // pred_check_branch
      %120 = sbr.rel (0) target = $region61
    $region60: #{tpu_custom_call.1} parent=1 // pred_region
      %121 = dma.done [#allocation13], 128
    $region61: #{tpu_custom_call.1} parent=1 // pred_fallthru
      _
    // Predicated region
    $region62: #{tpu_custom_call.1} parent=1 // pred_check
      _
    $region63: #{tpu_custom_call.1} parent=1 // pred_check_branch
      %123 = sbr.rel (0) target = $region65
    $region64: #{tpu_custom_call.1} parent=1 // pred_region
      %124 = dma.done [#allocation16], 128
    $region65: #{tpu_custom_call.1} parent=1 // pred_fallthru
      _
    %128 = vst [vmem:[#allocation2] sm:$0xf] 0
    %129 = vst [vmem:[#allocation2 + $0xc] sm:$0xf] 0
    %130 = vst [vmem:[#allocation2 + $0x10] sm:$0xf] 0
    %131 = vst [vmem:[#allocation2 + $0x1c] sm:$0xf] 0
    %v132 = vlaneseq
    %v133 = vand.u32 %v132, 127
    %v134 = vadd.s32 %v133, 128
    %v135 = vadd.s32 %v133, 256
    %v136 = vadd.s32 %v133, 384
    %vm137 = vcmp.lt.s32.totalorder %v133, 0
    %v138 = vsub.s32 0, %v133
    %v139 = vsel %vm137, %v138, %v133
    %v140 = vshrl.u32 %v139, 4
    %v141 = vand.u32 %v139, 15
    %v142 = vsub.s32 0, %v141
    %v143 = vsel %vm137, %v142, %v141
    %vm144 = vcmp.lt.s32.totalorder %v134, 0
    %v145 = vsub.s32 0, %v134
    %v146 = vsel %vm144, %v145, %v134
    %v147 = vshrl.u32 %v146, 4
    %v148 = vand.u32 %v146, 15
    %v149 = vsub.s32 0, %v148
    %v150 = vsel %vm144, %v149, %v148
    %vm151 = vcmp.lt.s32.totalorder %v135, 0
    %v152 = vsub.s32 0, %v135
    %v153 = vsel %vm151, %v152, %v135
    %v154 = vshrl.u32 %v153, 4
    %v155 = vand.u32 %v153, 15
    %v156 = vsub.s32 0, %v155
    %v157 = vsel %vm151, %v156, %v155
    %vm158 = vcmp.lt.s32.totalorder %v136, 0
    %v159 = vsub.s32 0, %v136
    %v160 = vsel %vm158, %v159, %v136
    %v161 = vshrl.u32 %v160, 4
    %v162 = vand.u32 %v160, 15
    %v163 = vsub.s32 0, %v162
    %v164 = vsel %vm158, %v163, %v162
    %vm165 = vcmp.ne.s32.totalorder %v143, 0
    %vm166 = vcmp.ne.s32.totalorder %v150, 0
    %vm167 = vcmp.ne.s32.totalorder %v157, 0
    %vm168 = vcmp.ne.s32.totalorder %v164, 0
    %vm169 = vcmp.lt.s32.totalorder %v143, 0
    %vm170 = vcmp.lt.s32.totalorder %v150, 0
    %vm171 = vcmp.lt.s32.totalorder %v157, 0
    %vm172 = vcmp.lt.s32.totalorder %v164, 0
    %vm173 = vmand %vm169, %vm165
    %vm174 = vmand %vm170, %vm166
    %vm175 = vmand %vm171, %vm167
    %vm176 = vmand %vm172, %vm168
    %v177 = vadd.s32 %v143, 16
    %v178 = vadd.s32 %v150, 16
    %v179 = vadd.s32 %v157, 16
    %v180 = vadd.s32 %v164, 16
    %v181 = vsel %vm173, %v177, %v143
    %v182 = vsel %vm174, %v178, %v150
    %v183 = vsel %vm175, %v179, %v157
    %v184 = vsel %vm176, %v180, %v164
    %vm185 = vcmp.ge.s32.totalorder %v181, 1
    %vm186 = vcmp.ge.s32.totalorder %v182, 1
    %vm187 = vcmp.ge.s32.totalorder %v183, 1
    %vm188 = vcmp.ge.s32.totalorder %v184, 1
    %vm189 = vcmp.le.s32.totalorder %v181, 14
    %vm190 = vcmp.le.s32.totalorder %v182, 14
    %vm191 = vcmp.le.s32.totalorder %v183, 14
    %vm192 = vcmp.le.s32.totalorder %v184, 14
    %v193 = vld [vmem:[#allocation3] sm:$0xff]
    %v194 = vld [vmem:[#allocation3 + $0x8] sm:$0xff]
    %v195 = vpack.c.bf16 %v193, %v193
    %v196 = vpack.c.bf16 %v194, %v194
    %v199 = vunpack.c.l.b16 %v195
    %v200 = vunpack.c.l.b16 %v196
    %v201 = vpack.c.b16 %v200, %v199
    %203 = vst [vmem:[#allocation2 + $0x4] sm:$0xff] %v201
    %s204 = scalar_lea.vmem [#allocation3], 16
    %v205 = vld [vmem:[%s204] sm:$0xff]
    %v206 = vld [vmem:[%s204 + $0x8] sm:$0xff]
    %v207 = vpack.c.bf16 %v205, %v205
    %v208 = vpack.c.bf16 %v206, %v206
    %v211 = vunpack.c.l.b16 %v207
    %v212 = vunpack.c.l.b16 %v208
    %v213 = vpack.c.b16 %v212, %v211
    %215 = vst [vmem:[#allocation2 + $0x14] sm:$0xff] %v213
    %v216 = vld [vmem:[#allocation2] sm:$0xff]
    %v217 = vld [vmem:[#allocation2 + $0x8] sm:$0xf]
    %v218 = vld [vmem:[#allocation2 + $0x10] sm:$0xff]
    %v219 = vld [vmem:[#allocation2 + $0x18] sm:$0xf]
    %v222 = vunpack.c.l.b16 %v216
    %v223 = vunpack.c.h.b16 %v216
    %v224 = vunpack.c.l.b16 %v217
    %v225 = vpack.c.b16 %v222, %v222
    %v226 = vpack.c.b16 %v223, %v223
    %v227 = vpack.c.b16 %v224, %v224
    %228 = vrot.lane.b32.xlu0 %v225, 17
    %v229 = vpop.permute.xlu0 %228
    %230 = vrot.lane.b32.xlu0 %v226, 17
    %v231 = vpop.permute.xlu0 %230
    %232 = vrot.lane.b32.xlu0 %v227, 17
    %v233 = vpop.permute.xlu0 %232
    %vm234 = vcmask 138240
    %v235 = vsel %vm234, %v229, %v231
    %v236 = vsel %vm234, %v231, %v233
    %v241 = vunpack.c.l.b16 %v218
    %v242 = vunpack.c.h.b16 %v218
    %v243 = vunpack.c.l.b16 %v219
    %v244 = vpack.c.b16 %v241, %v241
    %v245 = vpack.c.b16 %v242, %v242
    %v246 = vpack.c.b16 %v243, %v243
    %247 = vrot.lane.b32.xlu0 %v244, 17
    %v248 = vpop.permute.xlu0 %247
    %249 = vrot.lane.b32.xlu0 %v245, 17
    %v250 = vpop.permute.xlu0 %249
    %251 = vrot.lane.b32.xlu0 %v246, 17
    %v252 = vpop.permute.xlu0 %251
    %v253 = vsel %vm234, %v248, %v250
    %v254 = vsel %vm234, %v250, %v252
    %v257 = vsel %vm185, 1, 0
    %v258 = vsel %vm186, 1, 0
    %v259 = vsel %vm187, 1, 0
    %v260 = vsel %vm188, 1, 0
    %vm261 = vcmp.eq.s32.totalorder %v257, 1
    %vm262 = vcmp.eq.s32.totalorder %v258, 1
    %vm263 = vcmp.eq.s32.totalorder %v259, 1
    %vm264 = vcmp.eq.s32.totalorder %v260, 1
    %vm265 = vmpackc.low %vm262, %vm261
    %vm266 = vmpackc.low %vm264, %vm263
    %v267 = vsel %vm265, 65537, 0
    %v268 = vsel %vm266, 65537, 0
    %v269 = vlaneseq
    %v270 = vshrl.u32 %v269, 7
    %v271 = vsub.s32 0, %v270
    %v272 = vrot.slane %v267, %v271
    %v273 = vlaneseq
    %v274 = vshrl.u32 %v273, 7
    %v275 = vsub.s32 4, %v274
    %v276 = vrot.slane %v267, %v275
    %v277 = vlaneseq
    %v278 = vshrl.u32 %v277, 7
    %v279 = vsub.s32 0, %v278
    %v280 = vrot.slane %v268, %v279
    %v281 = vlaneseq
    %v282 = vshrl.u32 %v281, 7
    %v283 = vsub.s32 4, %v282
    %v284 = vrot.slane %v268, %v283
    %vm285 = vcmp.ne.s16.totalorder %v272, 0
    %vm286 = vcmp.ne.s16.totalorder %v276, 0
    %vm287 = vcmp.ne.s16.totalorder %v280, 0
    %vm288 = vcmp.ne.s16.totalorder %v284, 0
    %v289 = vsel %vm285, %v235, 0
    %v290 = vsel %vm286, %v236, 0
    %v291 = vsel %vm287, %v253, 0
    %v292 = vsel %vm288, %v254, 0
    %293 = vrot.lane.b32.xlu0 %v225, 16
    %v294 = vpop.permute.xlu0 %293
    %295 = vrot.lane.b32.xlu0 %v226, 16
    %v296 = vpop.permute.xlu0 %295
    %297 = vrot.lane.b32.xlu0 %v227, 16
    %v298 = vpop.permute.xlu0 %297
    %vm299 = vcmask 130048
    %v300 = vsel %vm299, %v294, %v296
    %v301 = vsel %vm299, %v296, %v298
    %302 = vrot.lane.b32.xlu0 %v244, 16
    %v303 = vpop.permute.xlu0 %302
    %304 = vrot.lane.b32.xlu0 %v245, 16
    %v305 = vpop.permute.xlu0 %304
    %306 = vrot.lane.b32.xlu0 %v246, 16
    %v307 = vpop.permute.xlu0 %306
    %v308 = vsel %vm299, %v303, %v305
    %v309 = vsel %vm299, %v305, %v307
    %310 = vrot.lane.b32.xlu0 %v225, 15
    %v311 = vpop.permute.xlu0 %310
    %312 = vrot.lane.b32.xlu0 %v226, 15
    %v313 = vpop.permute.xlu0 %312
    %314 = vrot.lane.b32.xlu0 %v227, 15
    %v315 = vpop.permute.xlu0 %314
    %vm316 = vcmask 121856
    %v317 = vsel %vm316, %v311, %v313
    %v318 = vsel %vm316, %v313, %v315
    %321 = vrot.lane.b32.xlu0 %v244, 15
    %v322 = vpop.permute.xlu0 %321
    %323 = vrot.lane.b32.xlu0 %v245, 15
    %v324 = vpop.permute.xlu0 %323
    %325 = vrot.lane.b32.xlu0 %v246, 15
    %v326 = vpop.permute.xlu0 %325
    %v327 = vsel %vm316, %v322, %v324
    %v328 = vsel %vm316, %v324, %v326
    %v331 = vsel %vm189, 1, 0
    %v332 = vsel %vm190, 1, 0
    %v333 = vsel %vm191, 1, 0
    %v334 = vsel %vm192, 1, 0
    %vm335 = vcmp.eq.s32.totalorder %v331, 1
    %vm336 = vcmp.eq.s32.totalorder %v332, 1
    %vm337 = vcmp.eq.s32.totalorder %v333, 1
    %vm338 = vcmp.eq.s32.totalorder %v334, 1
    %vm339 = vmpackc.low %vm336, %vm335
    %vm340 = vmpackc.low %vm338, %vm337
    %v341 = vsel %vm339, 65537, 0
    %v342 = vsel %vm340, 65537, 0
    %v343 = vlaneseq
    %v344 = vshrl.u32 %v343, 7
    %v345 = vsub.s32 0, %v344
    %v346 = vrot.slane %v341, %v345
    %v347 = vlaneseq
    %v348 = vshrl.u32 %v347, 7
    %v349 = vsub.s32 4, %v348
    %v350 = vrot.slane %v341, %v349
    %v351 = vlaneseq
    %v352 = vshrl.u32 %v351, 7
    %v353 = vsub.s32 0, %v352
    %v354 = vrot.slane %v342, %v353
    %v355 = vlaneseq
    %v356 = vshrl.u32 %v355, 7
    %v357 = vsub.s32 4, %v356
    %v358 = vrot.slane %v342, %v357
    %vm359 = vcmp.ne.s16.totalorder %v346, 0
    %vm360 = vcmp.ne.s16.totalorder %v350, 0
    %vm361 = vcmp.ne.s16.totalorder %v354, 0
    %vm362 = vcmp.ne.s16.totalorder %v358, 0
    %v363 = vsel %vm359, %v317, 0
    %v364 = vsel %vm360, %v318, 0
    %v365 = vsel %vm361, %v327, 0
    %v366 = vsel %vm362, %v328, 0
    %367 = vrot.lane.b32.xlu0 %v225, 1
    %v368 = vpop.permute.xlu0 %367
    %369 = vrot.lane.b32.xlu0 %v226, 1
    %v370 = vpop.permute.xlu0 %369
    %371 = vrot.lane.b32.xlu0 %v227, 1
    %v372 = vpop.permute.xlu0 %371
    %vm373 = vcmask 7168
    %v374 = vsel %vm373, %v368, %v370
    %v375 = vsel %vm373, %v370, %v372
    %378 = vrot.lane.b32.xlu0 %v244, 1
    %v379 = vpop.permute.xlu0 %378
    %380 = vrot.lane.b32.xlu0 %v245, 1
    %v381 = vpop.permute.xlu0 %380
    %382 = vrot.lane.b32.xlu0 %v246, 1
    %v383 = vpop.permute.xlu0 %382
    %v384 = vsel %vm373, %v379, %v381
    %v385 = vsel %vm373, %v381, %v383
    %v388 = vsel %vm285, %v374, 0
    %v389 = vsel %vm286, %v375, 0
    %v390 = vsel %vm287, %v384, 0
    %v391 = vsel %vm288, %v385, 0
    %v392 = vld [vmem:[#allocation2 + $0x4] sm:$0xff]
    %v393 = vld [vmem:[#allocation2 + $0x14] sm:$0xff]
    %v395 = vunpack.c.l.b16 %v392
    %v396 = vunpack.c.h.b16 %v392
    %v397 = vpack.c.b16 %v395, %v395
    %v398 = vpack.c.b16 %v396, %v396
    %v400 = vunpack.c.l.b16 %v393
    %v401 = vunpack.c.h.b16 %v393
    %v402 = vpack.c.b16 %v400, %v400
    %v403 = vpack.c.b16 %v401, %v401
    %v404 = vld [vmem:[#allocation2 + $0xc] sm:$0xf]
    %v405 = vld [vmem:[#allocation2 + $0x14] sm:$0xff]
    %v406 = vld [vmem:[#allocation2 + $0x1c] sm:$0xf]
    %v408 = vunpack.c.l.b16 %v404
    %v409 = vpack.c.b16 %v408, %v408
    %410 = vrot.lane.b32.xlu0 %v397, 127
    %v411 = vpop.permute.xlu0 %410
    %412 = vrot.lane.b32.xlu0 %v398, 127
    %v413 = vpop.permute.xlu0 %412
    %414 = vrot.lane.b32.xlu0 %v409, 127
    %v415 = vpop.permute.xlu0 %414
    %vm416 = vcmask 1039360
    %v417 = vsel %vm416, %v411, %v413
    %v418 = vsel %vm416, %v413, %v415
    %v423 = vunpack.c.l.b16 %v405
    %v424 = vunpack.c.h.b16 %v405
    %v425 = vunpack.c.l.b16 %v406
    %v426 = vpack.c.b16 %v423, %v423
    %v427 = vpack.c.b16 %v424, %v424
    %v428 = vpack.c.b16 %v425, %v425
    %429 = vrot.lane.b32.xlu0 %v426, 127
    %v430 = vpop.permute.xlu0 %429
    %431 = vrot.lane.b32.xlu0 %v427, 127
    %v432 = vpop.permute.xlu0 %431
    %433 = vrot.lane.b32.xlu0 %v428, 127
    %v434 = vpop.permute.xlu0 %433
    %v435 = vsel %vm416, %v430, %v432
    %v436 = vsel %vm416, %v432, %v434
    %v439 = vsel %vm359, %v417, 0
    %v440 = vsel %vm360, %v418, 0
    %v441 = vsel %vm361, %v435, 0
    %v442 = vsel %vm362, %v436, 0
    %443 = vrot.lane.b32.xlu0 %v397, 113
    %v444 = vpop.permute.xlu0 %443
    %445 = vrot.lane.b32.xlu0 %v398, 113
    %v446 = vpop.permute.xlu0 %445
    %447 = vrot.lane.b32.xlu0 %v409, 113
    %v448 = vpop.permute.xlu0 %447
    %vm449 = vcmask 924672
    %v450 = vsel %vm449, %v444, %v446
    %v451 = vsel %vm449, %v446, %v448
    %454 = vrot.lane.b32.xlu0 %v426, 113
    %v455 = vpop.permute.xlu0 %454
    %456 = vrot.lane.b32.xlu0 %v427, 113
    %v457 = vpop.permute.xlu0 %456
    %458 = vrot.lane.b32.xlu0 %v428, 113
    %v459 = vpop.permute.xlu0 %458
    %v460 = vsel %vm449, %v455, %v457
    %v461 = vsel %vm449, %v457, %v459
    %v464 = vsel %vm285, %v450, 0
    %v465 = vsel %vm286, %v451, 0
    %v466 = vsel %vm287, %v460, 0
    %v467 = vsel %vm288, %v461, 0
    %468 = vrot.lane.b32.xlu0 %v397, 112
    %v469 = vpop.permute.xlu0 %468
    %470 = vrot.lane.b32.xlu0 %v398, 112
    %v471 = vpop.permute.xlu0 %470
    %472 = vrot.lane.b32.xlu0 %v409, 112
    %v473 = vpop.permute.xlu0 %472
    %vm474 = vcmask 916480
    %v475 = vsel %vm474, %v469, %v471
    %v476 = vsel %vm474, %v471, %v473
    %477 = vrot.lane.b32.xlu0 %v426, 112
    %v478 = vpop.permute.xlu0 %477
    %479 = vrot.lane.b32.xlu0 %v427, 112
    %v480 = vpop.permute.xlu0 %479
    %481 = vrot.lane.b32.xlu0 %v428, 112
    %v482 = vpop.permute.xlu0 %481
    %v483 = vsel %vm474, %v478, %v480
    %v484 = vsel %vm474, %v480, %v482
    %485 = vrot.lane.b32.xlu0 %v397, 111
    %v486 = vpop.permute.xlu0 %485
    %487 = vrot.lane.b32.xlu0 %v398, 111
    %v488 = vpop.permute.xlu0 %487
    %489 = vrot.lane.b32.xlu0 %v409, 111
    %v490 = vpop.permute.xlu0 %489
    %vm491 = vcmask 908288
    %v492 = vsel %vm491, %v486, %v488
    %v493 = vsel %vm491, %v488, %v490
    %496 = vrot.lane.b32.xlu0 %v426, 111
    %v497 = vpop.permute.xlu0 %496
    %498 = vrot.lane.b32.xlu0 %v427, 111
    %v499 = vpop.permute.xlu0 %498
    %500 = vrot.lane.b32.xlu0 %v428, 111
    %v501 = vpop.permute.xlu0 %500
    %v502 = vsel %vm491, %v497, %v499
    %v503 = vsel %vm491, %v499, %v501
    %v506 = vsel %vm359, %v492, 0
    %v507 = vsel %vm360, %v493, 0
    %v508 = vsel %vm361, %v502, 0
    %v509 = vsel %vm362, %v503, 0
    %v510 = vrot.slane %v300, 4
    %v511 = vrot.slane %v301, 4
    %v512 = vrot.slane %v308, 4
    %v513 = vrot.slane %v309, 4
    %v518 = vrot.slane %v388, 4
    %v519 = vrot.slane %v389, 4
    %v520 = vrot.slane %v390, 4
    %v521 = vrot.slane %v391, 4
    %v526 = vrot.slane %v439, 4
    %v527 = vrot.slane %v440, 4
    %v528 = vrot.slane %v441, 4
    %v529 = vrot.slane %v442, 4
    %v530 = vrot.slane %v475, 4
    %v531 = vrot.slane %v476, 4
    %v532 = vrot.slane %v483, 4
    %v533 = vrot.slane %v484, 4
    %vm534 = vcmask 1043456
    %v537 = vsel %vm534, %v289, %v510
    %v541 = vsel %vm534, %v290, %v511
    %v545 = vsel %vm534, %v291, %v512
    %v549 = vsel %vm534, %v292, %v513
    %v553 = vsel %vm534, %v363, %v518
    %v557 = vsel %vm534, %v364, %v519
    %v561 = vsel %vm534, %v365, %v520
    %v565 = vsel %vm534, %v366, %v521
    %v569 = vsel %vm534, %v397, %v526
    %v573 = vsel %vm534, %v398, %v527
    %v577 = vsel %vm534, %v402, %v528
    %v581 = vsel %vm534, %v403, %v529
    %v585 = vsel %vm534, %v464, %v530
    %v589 = vsel %vm534, %v465, %v531
    %v593 = vsel %vm534, %v466, %v532
    %v597 = vsel %vm534, %v467, %v533
    %v599 = vld [vmem:[#allocation6] sm:$0xf]
    %vm600 = vcmask 588800
    %v602 = vsel %vm600, %v599, 0
    %v605 = vsel %vm534, %v506, 0
    %v608 = vsel %vm534, %v507, 0
    %v611 = vsel %vm534, %v508, 0
    %v614 = vsel %vm534, %v509, 0
    %616 = vmatprep.subr.bf16.mxu0 %v541
    %617 = vmatpush1.bf16.msra.mxu0 %v537
    %618 = vmatprep.subr.bf16.mxu0 %v557
    %619 = vmatpush1.bf16.msra.mxu0 %v553
    %620 = vmatprep.subr.bf16.mxu0 %v573
    %621 = vmatpush1.bf16.msra.mxu0 %v569
    %622 = vmatprep.subr.bf16.mxu0 %v589
    %623 = vmatpush1.bf16.msra.mxu0 %v585
    %624 = vmatprep.subr.bf16.mxu0 %v608
    %625 = vmatpush1.bf16.msra.mxu0 %v605
    %626 = vmatprep.subr.bf16.mxu0 0
    %627 = vmatpush1.bf16.msra.mxu0 0
    %628 = vmatprep.subr.bf16.mxu0 0
    %629 = vmatpush1.bf16.msra.mxu0 0
    %630 = vmatprep.subr.bf16.mxu0 0
    %631 = vmatpush1.bf16.msra.mxu0 0
    %632 = vmatprep.subr.bf16.mxu0 0
    %633 = vmatpush1.bf16.msra.mxu0 0
    %634 = vmatprep.subr.bf16.mxu0 0
    %635 = vmatpush1.bf16.msra.mxu0 0
    %636 = vmatprep.subr.bf16.mxu0 0
    %637 = vmatpush1.bf16.msra.mxu0 0
    %638 = vmatprep.subr.bf16.mxu0 0
    %639 = vmatpush1.bf16.msra.mxu0 0
    %640 = vmatprep.subr.bf16.mxu0 0
    %641 = vmatpush1.bf16.msra.mxu0 0
    %642 = vmatprep.subr.bf16.mxu0 0
    %643 = vmatpush1.bf16.msra.mxu0 0
    %644 = vmatprep.subr.bf16.mxu0 0
    %645 = vmatpush1.bf16.msra.mxu0 0
    %646 = vmatprep.subr.bf16.mxu0 0
    %647 = vmatpush1.bf16.msra.mxu0 0
    %648 = vmatprep.mubr.bf16.mxu0 0
    %649 = vmatmul.mubr.bf16.gmra.mrb[0].mxu0 %v602
    %v650 = vpop.f32.mrb[0].mxu0
    %v651 = vadd.f32 0.0, %v650
    %v652 = vpop.f32.mrb[0].mxu0
    %v653 = vadd.f32 0.0, %v652
    %v654 = vpop.f32.mrb[0].mxu0
    %v655 = vpop.f32.mrb[0].mxu0
    %656 = vdwg.mxu0
    %657 = vmatprep.subr.bf16.mxu0 %v549
    %658 = vmatpush1.bf16.msra.mxu0 %v545
    %659 = vmatprep.subr.bf16.mxu0 %v565
    %660 = vmatpush1.bf16.msra.mxu0 %v561
    %661 = vmatprep.subr.bf16.mxu0 %v581
    %662 = vmatpush1.bf16.msra.mxu0 %v577
    %663 = vmatprep.subr.bf16.mxu0 %v597
    %664 = vmatpush1.bf16.msra.mxu0 %v593
    %665 = vmatprep.subr.bf16.mxu0 %v614
    %666 = vmatpush1.bf16.msra.mxu0 %v611
    %667 = vmatprep.subr.bf16.mxu0 0
    %668 = vmatpush1.bf16.msra.mxu0 0
    %669 = vmatprep.subr.bf16.mxu0 0
    %670 = vmatpush1.bf16.msra.mxu0 0
    %671 = vmatprep.subr.bf16.mxu0 0
    %672 = vmatpush1.bf16.msra.mxu0 0
    %673 = vmatprep.subr.bf16.mxu0 0
    %674 = vmatpush1.bf16.msra.mxu0 0
    %675 = vmatprep.subr.bf16.mxu0 0
    %676 = vmatpush1.bf16.msra.mxu0 0
    %677 = vmatprep.subr.bf16.mxu0 0
    %678 = vmatpush1.bf16.msra.mxu0 0
    %679 = vmatprep.subr.bf16.mxu0 0
    %680 = vmatpush1.bf16.msra.mxu0 0
    %681 = vmatprep.subr.bf16.mxu0 0
    %682 = vmatpush1.bf16.msra.mxu0 0
    %683 = vmatprep.subr.bf16.mxu0 0
    %684 = vmatpush1.bf16.msra.mxu0 0
    %685 = vmatprep.subr.bf16.mxu0 0
    %686 = vmatpush1.bf16.msra.mxu0 0
    %687 = vmatprep.subr.bf16.mxu0 0
    %688 = vmatpush1.bf16.msra.mxu0 0
    %689 = vmatprep.mubr.bf16.mxu0 0
    %690 = vmatmul.mubr.bf16.gmra.mrb[0].mxu0 %v602
    %v691 = vpop.f32.mrb[0].mxu0
    %v692 = vadd.f32 0.0, %v691
    %v693 = vpop.f32.mrb[0].mxu0
    %v694 = vadd.f32 0.0, %v693
    %v695 = vpop.f32.mrb[0].mxu0
    %v696 = vpop.f32.mrb[0].mxu0
    %697 = vdwg.mxu0
    %v698 = vld [vmem:[#allocation8] sm:$0xff]
    %700 = vset.pattern.permute.xlu0 0
    %701 = vperm.xlu0 %700, %v698
    %v702 = vpop.permute.xlu0 %701
    %v704 = vmul.f32 %v651, %v702
    %v705 = vmul.f32 %v653, %v702
    %v706 = vmul.f32 %v692, %v702
    %v707 = vmul.f32 %v694, %v702
    %v708 = vld [vmem:[#allocation9] sm:$0xff]
    %710 = vset.pattern.permute.xlu0 0
    %711 = vperm.xlu0 %710, %v708
    %v712 = vpop.permute.xlu0 %711
    %v714 = vadd.f32 %v704, %v712
    %v715 = vadd.f32 %v705, %v712
    %v716 = vadd.f32 %v706, %v712
    %v717 = vadd.f32 %v707, %v712
    %v718 = vmax.f32 %v714, 0.0
    %v719 = vmax.f32 %v715, 0.0
    %v720 = vmax.f32 %v716, 0.0
    %v721 = vmax.f32 %v717, 0.0
    %v722 = vpack.c.bf16 %v718, %v718
    %v723 = vpack.c.bf16 %v719, %v719
    %v726 = vunpack.c.l.b16 %v722
    %v727 = vunpack.c.l.b16 %v723
    %v728 = vpack.c.b16 %v727, %v726
    %730 = vst [vmem:[#allocation2 + $0x4] sm:$0xff] %v728
    %v731 = vpack.c.bf16 %v720, %v720
    %v732 = vpack.c.bf16 %v721, %v721
    %v735 = vunpack.c.l.b16 %v731
    %v736 = vunpack.c.l.b16 %v732
    %v737 = vpack.c.b16 %v736, %v735
    %739 = vst [vmem:[#allocation2 + $0x14] sm:$0xff] %v737
    %v740 = vld [vmem:[#allocation2] sm:$0xff]
    %v741 = vld [vmem:[#allocation2 + $0x8] sm:$0xf]
    %v742 = vld [vmem:[#allocation2 + $0x10] sm:$0xff]
    %v743 = vld [vmem:[#allocation2 + $0x18] sm:$0xf]
    %v746 = vunpack.c.l.b16 %v740
    %v747 = vunpack.c.h.b16 %v740
    %v748 = vunpack.c.l.b16 %v741
    %v749 = vpack.c.b16 %v746, %v746
    %v750 = vpack.c.b16 %v747, %v747
    %v751 = vpack.c.b16 %v748, %v748
    %752 = vrot.lane.b32.xlu0 %v749, 17
    %v753 = vpop.permute.xlu0 %752
    %754 = vrot.lane.b32.xlu0 %v750, 17
    %v755 = vpop.permute.xlu0 %754
    %756 = vrot.lane.b32.xlu0 %v751, 17
    %v757 = vpop.permute.xlu0 %756
    %v758 = vsel %vm234, %v753, %v755
    %v759 = vsel %vm234, %v755, %v757
    %v764 = vunpack.c.l.b16 %v742
    %v765 = vunpack.c.h.b16 %v742
    %v766 = vunpack.c.l.b16 %v743
    %v767 = vpack.c.b16 %v764, %v764
    %v768 = vpack.c.b16 %v765, %v765
    %v769 = vpack.c.b16 %v766, %v766
    %770 = vrot.lane.b32.xlu0 %v767, 17
    %v771 = vpop.permute.xlu0 %770
    %772 = vrot.lane.b32.xlu0 %v768, 17
    %v773 = vpop.permute.xlu0 %772
    %774 = vrot.lane.b32.xlu0 %v769, 17
    %v775 = vpop.permute.xlu0 %774
    %v776 = vsel %vm234, %v771, %v773
    %v777 = vsel %vm234, %v773, %v775
    %v780 = vsel %vm285, %v758, 0
    %v781 = vsel %vm286, %v759, 0
    %v782 = vsel %vm287, %v776, 0
    %v783 = vsel %vm288, %v777, 0
    %784 = vrot.lane.b32.xlu0 %v749, 16
    %v785 = vpop.permute.xlu0 %784
    %786 = vrot.lane.b32.xlu0 %v750, 16
    %v787 = vpop.permute.xlu0 %786
    %788 = vrot.lane.b32.xlu0 %v751, 16
    %v789 = vpop.permute.xlu0 %788
    %v790 = vsel %vm299, %v785, %v787
    %v791 = vsel %vm299, %v787, %v789
    %792 = vrot.lane.b32.xlu0 %v767, 16
    %v793 = vpop.permute.xlu0 %792
    %794 = vrot.lane.b32.xlu0 %v768, 16
    %v795 = vpop.permute.xlu0 %794
    %796 = vrot.lane.b32.xlu0 %v769, 16
    %v797 = vpop.permute.xlu0 %796
    %v798 = vsel %vm299, %v793, %v795
    %v799 = vsel %vm299, %v795, %v797
    %800 = vrot.lane.b32.xlu0 %v749, 15
    %v801 = vpop.permute.xlu0 %800
    %802 = vrot.lane.b32.xlu0 %v750, 15
    %v803 = vpop.permute.xlu0 %802
    %804 = vrot.lane.b32.xlu0 %v751, 15
    %v805 = vpop.permute.xlu0 %804
    %v806 = vsel %vm316, %v801, %v803
    %v807 = vsel %vm316, %v803, %v805
    %810 = vrot.lane.b32.xlu0 %v767, 15
    %v811 = vpop.permute.xlu0 %810
    %812 = vrot.lane.b32.xlu0 %v768, 15
    %v813 = vpop.permute.xlu0 %812
    %814 = vrot.lane.b32.xlu0 %v769, 15
    %v815 = vpop.permute.xlu0 %814
    %v816 = vsel %vm316, %v811, %v813
    %v817 = vsel %vm316, %v813, %v815
    %v820 = vsel %vm359, %v806, 0
    %v821 = vsel %vm360, %v807, 0
    %v822 = vsel %vm361, %v816, 0
    %v823 = vsel %vm362, %v817, 0
    %824 = vrot.lane.b32.xlu0 %v749, 1
    %v825 = vpop.permute.xlu0 %824
    %826 = vrot.lane.b32.xlu0 %v750, 1
    %v827 = vpop.permute.xlu0 %826
    %828 = vrot.lane.b32.xlu0 %v751, 1
    %v829 = vpop.permute.xlu0 %828
    %v830 = vsel %vm373, %v825, %v827
    %v831 = vsel %vm373, %v827, %v829
    %834 = vrot.lane.b32.xlu0 %v767, 1
    %v835 = vpop.permute.xlu0 %834
    %836 = vrot.lane.b32.xlu0 %v768, 1
    %v837 = vpop.permute.xlu0 %836
    %838 = vrot.lane.b32.xlu0 %v769, 1
    %v839 = vpop.permute.xlu0 %838
    %v840 = vsel %vm373, %v835, %v837
    %v841 = vsel %vm373, %v837, %v839
    %v844 = vsel %vm285, %v830, 0
    %v845 = vsel %vm286, %v831, 0
    %v846 = vsel %vm287, %v840, 0
    %v847 = vsel %vm288, %v841, 0
    %v848 = vld [vmem:[#allocation2 + $0x4] sm:$0xff]
    %v849 = vld [vmem:[#allocation2 + $0x14] sm:$0xff]
    %v851 = vunpack.c.l.b16 %v848
    %v852 = vunpack.c.h.b16 %v848
    %v853 = vpack.c.b16 %v851, %v851
    %v854 = vpack.c.b16 %v852, %v852
    %v856 = vunpack.c.l.b16 %v849
    %v857 = vunpack.c.h.b16 %v849
    %v858 = vpack.c.b16 %v856, %v856
    %v859 = vpack.c.b16 %v857, %v857
    %v860 = vld [vmem:[#allocation2 + $0xc] sm:$0xf]
    %v861 = vld [vmem:[#allocation2 + $0x14] sm:$0xff]
    %v862 = vld [vmem:[#allocation2 + $0x1c] sm:$0xf]
    %v864 = vunpack.c.l.b16 %v860
    %v865 = vpack.c.b16 %v864, %v864
    %866 = vrot.lane.b32.xlu0 %v853, 127
    %v867 = vpop.permute.xlu0 %866
    %868 = vrot.lane.b32.xlu0 %v854, 127
    %v869 = vpop.permute.xlu0 %868
    %870 = vrot.lane.b32.xlu0 %v865, 127
    %v871 = vpop.permute.xlu0 %870
    %v872 = vsel %vm416, %v867, %v869
    %v873 = vsel %vm416, %v869, %v871
    %v878 = vunpack.c.l.b16 %v861
    %v879 = vunpack.c.h.b16 %v861
    %v880 = vunpack.c.l.b16 %v862
    %v881 = vpack.c.b16 %v878, %v878
    %v882 = vpack.c.b16 %v879, %v879
    %v883 = vpack.c.b16 %v880, %v880
    %884 = vrot.lane.b32.xlu0 %v881, 127
    %v885 = vpop.permute.xlu0 %884
    %886 = vrot.lane.b32.xlu0 %v882, 127
    %v887 = vpop.permute.xlu0 %886
    %888 = vrot.lane.b32.xlu0 %v883, 127
    %v889 = vpop.permute.xlu0 %888
    %v890 = vsel %vm416, %v885, %v887
    %v891 = vsel %vm416, %v887, %v889
    %v894 = vsel %vm359, %v872, 0
    %v895 = vsel %vm360, %v873, 0
    %v896 = vsel %vm361, %v890, 0
    %v897 = vsel %vm362, %v891, 0
    %898 = vrot.lane.b32.xlu0 %v853, 113
    %v899 = vpop.permute.xlu0 %898
    %900 = vrot.lane.b32.xlu0 %v854, 113
    %v901 = vpop.permute.xlu0 %900
    %902 = vrot.lane.b32.xlu0 %v865, 113
    %v903 = vpop.permute.xlu0 %902
    %v904 = vsel %vm449, %v899, %v901
    %v905 = vsel %vm449, %v901, %v903
    %908 = vrot.lane.b32.xlu0 %v881, 113
    %v909 = vpop.permute.xlu0 %908
    %910 = vrot.lane.b32.xlu0 %v882, 113
    %v911 = vpop.permute.xlu0 %910
    %912 = vrot.lane.b32.xlu0 %v883, 113
    %v913 = vpop.permute.xlu0 %912
    %v914 = vsel %vm449, %v909, %v911
    %v915 = vsel %vm449, %v911, %v913
    %v918 = vsel %vm285, %v904, 0
    %v919 = vsel %vm286, %v905, 0
    %v920 = vsel %vm287, %v914, 0
    %v921 = vsel %vm288, %v915, 0
    %922 = vrot.lane.b32.xlu0 %v853, 112
    %v923 = vpop.permute.xlu0 %922
    %924 = vrot.lane.b32.xlu0 %v854, 112
    %v925 = vpop.permute.xlu0 %924
    %926 = vrot.lane.b32.xlu0 %v865, 112
    %v927 = vpop.permute.xlu0 %926
    %v928 = vsel %vm474, %v923, %v925
    %v929 = vsel %vm474, %v925, %v927
    %930 = vrot.lane.b32.xlu0 %v881, 112
    %v931 = vpop.permute.xlu0 %930
    %932 = vrot.lane.b32.xlu0 %v882, 112
    %v933 = vpop.permute.xlu0 %932
    %934 = vrot.lane.b32.xlu0 %v883, 112
    %v935 = vpop.permute.xlu0 %934
    %v936 = vsel %vm474, %v931, %v933
    %v937 = vsel %vm474, %v933, %v935
    %938 = vrot.lane.b32.xlu0 %v853, 111
    %v939 = vpop.permute.xlu0 %938
    %940 = vrot.lane.b32.xlu0 %v854, 111
    %v941 = vpop.permute.xlu0 %940
    %942 = vrot.lane.b32.xlu0 %v865, 111
    %v943 = vpop.permute.xlu0 %942
    %v944 = vsel %vm491, %v939, %v941
    %v945 = vsel %vm491, %v941, %v943
    %948 = vrot.lane.b32.xlu0 %v881, 111
    %v949 = vpop.permute.xlu0 %948
    %950 = vrot.lane.b32.xlu0 %v882, 111
    %v951 = vpop.permute.xlu0 %950
    %952 = vrot.lane.b32.xlu0 %v883, 111
    %v953 = vpop.permute.xlu0 %952
    %v954 = vsel %vm491, %v949, %v951
    %v955 = vsel %vm491, %v951, %v953
    %v958 = vsel %vm359, %v944, 0
    %v959 = vsel %vm360, %v945, 0
    %v960 = vsel %vm361, %v954, 0
    %v961 = vsel %vm362, %v955, 0
    %v962 = vrot.slane %v790, 4
    %v963 = vrot.slane %v791, 4
    %v964 = vrot.slane %v798, 4
    %v965 = vrot.slane %v799, 4
    %v970 = vrot.slane %v844, 4
    %v971 = vrot.slane %v845, 4
    %v972 = vrot.slane %v846, 4
    %v973 = vrot.slane %v847, 4
    %v978 = vrot.slane %v894, 4
    %v979 = vrot.slane %v895, 4
    %v980 = vrot.slane %v896, 4
    %v981 = vrot.slane %v897, 4
    %v982 = vrot.slane %v928, 4
    %v983 = vrot.slane %v929, 4
    %v984 = vrot.slane %v936, 4
    %v985 = vrot.slane %v937, 4
    %v988 = vsel %vm534, %v780, %v962
    %v992 = vsel %vm534, %v781, %v963
    %v996 = vsel %vm534, %v782, %v964
    %v1000 = vsel %vm534, %v783, %v965
    %v1004 = vsel %vm534, %v820, %v970
    %v1008 = vsel %vm534, %v821, %v971
    %v1012 = vsel %vm534, %v822, %v972
    %v1016 = vsel %vm534, %v823, %v973
    %v1020 = vsel %vm534, %v853, %v978
    %v1024 = vsel %vm534, %v854, %v979
    %v1028 = vsel %vm534, %v858, %v980
    %v1032 = vsel %vm534, %v859, %v981
    %v1036 = vsel %vm534, %v918, %v982
    %v1040 = vsel %vm534, %v919, %v983
    %v1044 = vsel %vm534, %v920, %v984
    %v1048 = vsel %vm534, %v921, %v985
    %v1050 = vld [vmem:[#allocation11] sm:$0xf]
    %v1052 = vsel %vm600, %v1050, 0
    %v1055 = vsel %vm534, %v958, 0
    %v1058 = vsel %vm534, %v959, 0
    %v1061 = vsel %vm534, %v960, 0
    %v1064 = vsel %vm534, %v961, 0
    %1066 = vmatprep.subr.bf16.mxu0 %v992
    %1067 = vmatpush1.bf16.msra.mxu0 %v988
    %1068 = vmatprep.subr.bf16.mxu0 %v1008
    %1069 = vmatpush1.bf16.msra.mxu0 %v1004
    %1070 = vmatprep.subr.bf16.mxu0 %v1024
    %1071 = vmatpush1.bf16.msra.mxu0 %v1020
    %1072 = vmatprep.subr.bf16.mxu0 %v1040
    %1073 = vmatpush1.bf16.msra.mxu0 %v1036
    %1074 = vmatprep.subr.bf16.mxu0 %v1058
    %1075 = vmatpush1.bf16.msra.mxu0 %v1055
    %1076 = vmatprep.subr.bf16.mxu0 0
    %1077 = vmatpush1.bf16.msra.mxu0 0
    %1078 = vmatprep.subr.bf16.mxu0 0
    %1079 = vmatpush1.bf16.msra.mxu0 0
    %1080 = vmatprep.subr.bf16.mxu0 0
    %1081 = vmatpush1.bf16.msra.mxu0 0
    %1082 = vmatprep.subr.bf16.mxu0 0
    %1083 = vmatpush1.bf16.msra.mxu0 0
    %1084 = vmatprep.subr.bf16.mxu0 0
    %1085 = vmatpush1.bf16.msra.mxu0 0
    %1086 = vmatprep.subr.bf16.mxu0 0
    %1087 = vmatpush1.bf16.msra.mxu0 0
    %1088 = vmatprep.subr.bf16.mxu0 0
    %1089 = vmatpush1.bf16.msra.mxu0 0
    %1090 = vmatprep.subr.bf16.mxu0 0
    %1091 = vmatpush1.bf16.msra.mxu0 0
    %1092 = vmatprep.subr.bf16.mxu0 0
    %1093 = vmatpush1.bf16.msra.mxu0 0
    %1094 = vmatprep.subr.bf16.mxu0 0
    %1095 = vmatpush1.bf16.msra.mxu0 0
    %1096 = vmatprep.subr.bf16.mxu0 0
    %1097 = vmatpush1.bf16.msra.mxu0 0
    %1098 = vmatprep.mubr.bf16.mxu0 0
    %1099 = vmatmul.mubr.bf16.gmra.mrb[0].mxu0 %v1052
    %v1100 = vpop.f32.mrb[0].mxu0
    %v1101 = vadd.f32 0.0, %v1100
    %v1102 = vpop.f32.mrb[0].mxu0
    %v1103 = vadd.f32 0.0, %v1102
    %v1104 = vpop.f32.mrb[0].mxu0
    %v1105 = vpop.f32.mrb[0].mxu0
    %1106 = vdwg.mxu0
    %1107 = vmatprep.subr.bf16.mxu0 %v1000
    %1108 = vmatpush1.bf16.msra.mxu0 %v996
    %1109 = vmatprep.subr.bf16.mxu0 %v1016
    %1110 = vmatpush1.bf16.msra.mxu0 %v1012
    %1111 = vmatprep.subr.bf16.mxu0 %v1032
    %1112 = vmatpush1.bf16.msra.mxu0 %v1028
    %1113 = vmatprep.subr.bf16.mxu0 %v1048
    %1114 = vmatpush1.bf16.msra.mxu0 %v1044
    %1115 = vmatprep.subr.bf16.mxu0 %v1064
    %1116 = vmatpush1.bf16.msra.mxu0 %v1061
    %1117 = vmatprep.subr.bf16.mxu0 0
    %1118 = vmatpush1.bf16.msra.mxu0 0
    %1119 = vmatprep.subr.bf16.mxu0 0
    %1120 = vmatpush1.bf16.msra.mxu0 0
    %1121 = vmatprep.subr.bf16.mxu0 0
    %1122 = vmatpush1.bf16.msra.mxu0 0
    %1123 = vmatprep.subr.bf16.mxu0 0
    %1124 = vmatpush1.bf16.msra.mxu0 0
    %1125 = vmatprep.subr.bf16.mxu0 0
    %1126 = vmatpush1.bf16.msra.mxu0 0
    %1127 = vmatprep.subr.bf16.mxu0 0
    %1128 = vmatpush1.bf16.msra.mxu0 0
    %1129 = vmatprep.subr.bf16.mxu0 0
    %1130 = vmatpush1.bf16.msra.mxu0 0
    %1131 = vmatprep.subr.bf16.mxu0 0
    %1132 = vmatpush1.bf16.msra.mxu0 0
    %1133 = vmatprep.subr.bf16.mxu0 0
    %1134 = vmatpush1.bf16.msra.mxu0 0
    %1135 = vmatprep.subr.bf16.mxu0 0
    %1136 = vmatpush1.bf16.msra.mxu0 0
    %1137 = vmatprep.subr.bf16.mxu0 0
    %1138 = vmatpush1.bf16.msra.mxu0 0
    %1139 = vmatprep.mubr.bf16.mxu0 0
    %1140 = vmatmul.mubr.bf16.gmra.mrb[0].mxu0 %v1052
    %v1141 = vpop.f32.mrb[0].mxu0
    %v1142 = vadd.f32 0.0, %v1141
    %v1143 = vpop.f32.mrb[0].mxu0
    %v1144 = vadd.f32 0.0, %v1143
    %v1145 = vpop.f32.mrb[0].mxu0
    %v1146 = vpop.f32.mrb[0].mxu0
    %1147 = vdwg.mxu0
    %v1148 = vld [vmem:[#allocation12] sm:$0xff]
    %1150 = vset.pattern.permute.xlu0 0
    %1151 = vperm.xlu0 %1150, %v1148
    %v1152 = vpop.permute.xlu0 %1151
    %v1154 = vmul.f32 %v1101, %v1152
    %v1155 = vmul.f32 %v1103, %v1152
    %v1156 = vmul.f32 %v1142, %v1152
    %v1157 = vmul.f32 %v1144, %v1152
    %v1158 = vld [vmem:[#allocation14] sm:$0xff]
    %1160 = vset.pattern.permute.xlu0 0
    %1161 = vperm.xlu0 %1160, %v1158
    %v1162 = vpop.permute.xlu0 %1161
    %v1164 = vadd.f32 %v1154, %v1162
    %v1165 = vadd.f32 %v1155, %v1162
    %v1166 = vadd.f32 %v1156, %v1162
    %v1167 = vadd.f32 %v1157, %v1162
    %v1168 = vadd.f32 %v1164, %v1165
    %1169 = vadd.xlane.f32.xlu0 %v1168
    %v1170 = vpop.xlane.xlu0 %1169
    %v1171 = vrcp.pop 256.0
    %v1172 = vmul.f32 %v1170, %v1171
    %v1173 = vadd.f32 %v1166, %v1167
    %1174 = vadd.xlane.f32.xlu0 %v1173
    %v1175 = vpop.xlane.xlu0 %1174
    %v1176 = vmul.f32 %v1175, %v1171
    %vm1177 = vcmask 7168
    %v1178 = vsel %vm1177, %v1172, %v1176
    %v1179 = vld [vmem:[#allocation15] sm:$0xff]
    %1181 = vset.pattern.permute.xlu0 1
    %1182 = vperm.xlu0 %1181, %v1179
    %v1183 = vpop.permute.xlu0 %1182
    %v1185 = vmul.f32 %v1183, %v1178
    %v1187 = vrot.slane %v1178, 7
    %vm1189 = vcmask 1040384
    %v1190 = vsel %vm1189, 0.0, %v1187
    %1191 = vset.pattern.permute.xlu0 0
    %1192 = vperm.xlu0 %1191, %v1179
    %v1193 = vpop.permute.xlu0 %1192
    %v1195 = vmul.f32 %v1193, %v1190
    %v1196 = vadd.f32 %v1185, %v1195
    %v1197 = vrot.slane %v1178, 1
    %vm1199 = vcmask 1046528
    %v1200 = vsel %vm1199, %v1197, 0.0
    %1201 = vset.pattern.permute.xlu0 2
    %1202 = vperm.xlu0 %1201, %v1179
    %v1203 = vpop.permute.xlu0 %1202
    %v1205 = vmul.f32 %v1203, %v1200
    %v1206 = vadd.f32 %v1196, %v1205
    %v1207 = vxor.u32 %v1206, 2147483648
    %v1208 = vmul.f32 %v1207, 1.442695
    %v1209 = vpow.pop %v1208
    %v1210 = vadd.f32 %v1209, 1.0
    %v1211 = vrcp.pop %v1210
    %v1212 = vmul.f32 1.0, %v1211
    %1214 = vset.pattern.permute.xlu0 0
    %1215 = vperm.xlu0 %1214, %v1212
    %v1216 = vpop.permute.xlu0 %1215
    %v1218 = vmul.f32 %v1164, %v1216
    %v1219 = vmul.f32 %v1165, %v1216
    %v1220 = vld [vmem:[#allocation3] sm:$0xff]
    %v1221 = vld [vmem:[#allocation3 + $0x8] sm:$0xff]
    %v1222 = vadd.f32 %v1218, %v1220
    %v1223 = vadd.f32 %v1219, %v1221
    %v1224 = vmax.f32 %v1222, 0.0
    %v1225 = vmax.f32 %v1223, 0.0
    %1226 = vst [vmem:[#allocation17] sm:$0xff] %v1224
    %1227 = vst [vmem:[#allocation17 + $0x8] sm:$0xff] %v1225
    %1228 = vset.pattern.permute.xlu0 1
    %1229 = vperm.xlu0 %1228, %v1212
    %v1230 = vpop.permute.xlu0 %1229
    %v1232 = vmul.f32 %v1166, %v1230
    %v1233 = vmul.f32 %v1167, %v1230
    %v1234 = vld [vmem:[%s204] sm:$0xff]
    %v1235 = vld [vmem:[%s204 + $0x8] sm:$0xff]
    %v1236 = vadd.f32 %v1232, %v1234
    %v1237 = vadd.f32 %v1233, %v1235
    %v1238 = vmax.f32 %v1236, 0.0
    %v1239 = vmax.f32 %v1237, 0.0
    %s1240 = scalar_lea.vmem [#allocation17], 16
    %1241 = vst [vmem:[%s1240] sm:$0xff] %v1238
    %1242 = vst [vmem:[%s1240 + $0x8] sm:$0xff] %v1239
    // Predicated region
    $region66: #{tpu_custom_call.1} parent=1 // pred_check
      _
    $region67: #{tpu_custom_call.1} parent=1 // pred_check_branch
      %1244 = sbr.rel (0) target = $region69
    $region68: #{tpu_custom_call.1} parent=1 // pred_region
      %s1246 = ssub.s32 512, 512
      %1247 = vsyncadd [#allocation5], %s1246
      %s1248 = sshll.u32 [#allocation17], 4
      %s1249 = int_to_ptr.vmem [resolvable:$true] %s1248
      %1254 = dma.vmem_to_hbm [thread:$0]  %s1249, 512, %s8, [#allocation5], 256, 256, 16
    $region69: #{tpu_custom_call.1} parent=1 // pred_fallthru
      _
    // Predicated region
    $region70: #{tpu_custom_call.1} parent=1 // pred_check
      _
    $region71: #{tpu_custom_call.1} parent=1 // pred_check_branch
      %1256 = sbr.rel (0) target = $region73
    $region72: #{tpu_custom_call.1} parent=1 // pred_region
      %1257 = dma.done [#allocation5], 512
    $region73: #{tpu_custom_call.1} parent=1 // pred_fallthru
      _
    %1258 = vsyncpa [#allocation4], 1
    %1259 = vsyncpa [#allocation7], 1
    %1260 = vsyncpa [#allocation10], 1
    %1261 = vsyncpa [#allocation13], 1
    %1262 = vsyncpa [#allocation16], 1
    %1263 = vsyncpa [#allocation5], 1

</llo_original>
